<compile_context>
chip_gen: v7x
topology: tpu7x:2x2x1
jax: 0.10.0
libtpu: 0.0.40
codegen_flags: <defaults>
</compile_context>

<pallas_src>
import jax
import jax.numpy as jnp
from jax import lax
from jax.experimental import pallas as pl
from jax.experimental.pallas import tpu as pltpu


# ---------------------------------------------------------------------------
# Fused kernel: per grid step (BB batch elements, all T timesteps)
#   u      = x @ w_in + b_in                      (MXU, M = T*BB rows, full-K)
#   h_t    = sigmoid(a) * h_{t-1} + u_t           (unrolled scan over static T,
#                                                  vectorized over BB rows)
#   Fm_t   = silu(h_t)          -> stored to VMEM scratch slab-by-slab
#   logits = Fm @ w_lin_pad + b_lin_pad           (MXU, lane-dense 128 wide)
#   pi     = softmax(logits)                      (reciprocal-multiply)
# ---------------------------------------------------------------------------
def fused_kernel(x_ref, w_in_ref, b_in_ref, a_ref, w_lin_ref, b_lin_ref,
                 pi_ref, fm_ref):
    # x_ref: (T, BB, D) T-major; w_in_ref: (D, H); b_in_ref/a_ref: (1, H)
    # w_lin_ref: (H, LP); b_lin_ref: (1, LP); pi_ref: (T, BB, LP)
    # fm_ref (scratch): (T*BB, H)
    T, BB, D = x_ref.shape
    H = w_in_ref.shape[1]

    # ---- input projection: one big MXU matmul over all BB*T rows ------------
    # (T, BB, D) -> (T*BB, D) is layout-preserving because BB % 8 == 0.
    u = jnp.dot(x_ref[...].reshape(T * BB, D), w_in_ref[...],
                preferred_element_type=jnp.float32) + b_in_ref[...]

    # ---- diagonal SSM recurrence, unrolled over static T, vector over BB ----
    a_sig = jax.nn.sigmoid(a_ref[...])                    # (1, H)
    h = jnp.zeros((BB, H), jnp.float32)
    for t in range(T):                                     # static unroll
        u_t = u[t * BB:(t + 1) * BB, :]                    # contiguous slab
        h = a_sig * h + u_t
        fm_ref[t * BB:(t + 1) * BB, :] = h * jax.nn.sigmoid(h)   # SiLU

    # ---- lane head: linear -> softmax (lane-dense, 128 wide) ----------------
    logits = jnp.dot(fm_ref[...], w_lin_ref[...],
                     preferred_element_type=jnp.float32) + b_lin_ref[...]
    m = jnp.max(logits, axis=-1, keepdims=True)
    e = jnp.exp(logits - m)                                # pad lanes -> 0
    inv = 1.0 / jnp.sum(e, axis=-1, keepdims=True)         # 1 divide per row
    pi = e * inv
    pi_ref[...] = pi.reshape(T, BB, pi.shape[-1]).astype(pi_ref.dtype)


# ---------------------------------------------------------------------------
# Module wrapper
# ---------------------------------------------------------------------------
def lane_aware_probability_learning(x, params, *, target_rows=256):
    """x: [B, T, input_dim] f32 -> (pi [B,T,num_lanes], lane_preds [B,T])."""
    B, T, D = x.shape
    H = params["w_in"].shape[1]
    L = params["w_lin"].shape[1]
    LP = 128                                   # lane-dense padded head width

    # ---- batch-block size: ~target_rows MXU rows per grid step, grid >= 2 ---
    # (target_rows=128 fills v5e's MXU; 256 fills v6e/v7x.)
    bb = max(1, min(target_rows // max(T, 1), B))
    if B >= 2:
        bb = min(bb, (B + 1) // 2)             # keep >=2 grid steps (v7x 2 TCs)
    bb = ((bb + 7) // 8) * 8                   # sublane-aligned batch block
    n_blocks = max(2 if B >= 2 else 1, pl.cdiv(B, bb))
    Bp = n_blocks * bb

    # ---- T-major layout so each scan step reads a contiguous (bb, H) slab ---
    xt = jnp.swapaxes(x, 0, 1)                 # (T, B, D)
    if Bp != B:
        xt = jnp.pad(xt, ((0, 0), (0, Bp - B), (0, 0)))   # zero-pad batches

    # Pad the lane head so the MXU runs full lane width and all kernel stores
    # are unmasked full-vreg stores.  Zero weight columns + (-1e30) bias make
    # the padded softmax lanes exactly zero (f32-only invariant).
    w_lin_p = jnp.zeros((H, LP), jnp.float32).at[:, :L].set(params["w_lin"])
    b_lin_p = jnp.full((1, LP), -1e30, jnp.float32).at[0, :L].set(params["b_lin"])

    pi_p = pl.pallas_call(
        fused_kernel,
        out_shape=jax.ShapeDtypeStruct((T, Bp, LP), jnp.float32),
        grid_spec=pltpu.PrefetchScalarGridSpec(
            num_scalar_prefetch=0,
            grid=(n_blocks,),
            in_specs=[
                pl.BlockSpec((T, bb, D), lambda i: (0, i, 0)),   # x (T-major)
                pl.BlockSpec((D, H), lambda i: (0, 0)),          # w_in resident
                pl.BlockSpec((1, H), lambda i: (0, 0)),          # b_in
                pl.BlockSpec((1, H), lambda i: (0, 0)),          # a_logit
                pl.BlockSpec((H, LP), lambda i: (0, 0)),         # w_lin padded
                pl.BlockSpec((1, LP), lambda i: (0, 0)),         # b_lin padded
            ],
            out_specs=pl.BlockSpec((T, bb, LP), lambda i: (0, i, 0)),
            scratch_shapes=[pltpu.VMEM((T * bb, H), jnp.float32)],   # fm
        ),
        compiler_params=pltpu.CompilerParams(
            dimension_semantics=("parallel",)),
    )(xt,
      params["w_in"],
      params["b_in"].reshape(1, H),
      params["a_logit"].reshape(1, H),
      w_lin_p,
      b_lin_p)

    pi = jnp.swapaxes(pi_p, 0, 1)[:B, :, :L]       # (B, T, L)
    lane_preds = jnp.argmax(pi, axis=-1)           # cheap wrapper-side argmax
    return pi, lane_preds


# ---------------------------------------------------------------------------
# Pure-JAX reference (same semantics, used for the correctness check)
# ---------------------------------------------------------------------------
def reference_forward(x, params):
    B, T, D = x.shape
    u = x.reshape(B * T, D) @ params["w_in"] + params["b_in"]
    u = u.reshape(B, T, -1)
    a_sig = jax.nn.sigmoid(params["a_logit"])

    def step(h, u_t):
        h = a_sig * h + u_t
        return h, h * jax.nn.sigmoid(h)

    _, fm = lax.scan(step, jnp.zeros((B, u.shape[-1]), jnp.float32),
                     jnp.swapaxes(u, 0, 1))
    fm = jnp.swapaxes(fm, 0, 1)
    logits = fm @ params["w_lin"] + params["b_lin"]
    pi = jax.nn.softmax(logits, axis=-1)
    return pi, jnp.argmax(pi, axis=-1)


if __name__ == "__main__":
    # Small, module-consistent shapes: x is [B, N+L, 3072].
    B, T = 16, 8
    input_dim, hidden_dim, num_lanes = 3072, 128, 6

    key = jax.random.PRNGKey(0)
    k_x, k_win, k_bin, k_a, k_wl, k_bl = jax.random.split(key, 6)

    x = jax.random.normal(k_x, (B, T, input_dim), dtype=jnp.float32)
    params = {
        "w_in": jax.random.normal(k_win, (input_dim, hidden_dim),
                                  dtype=jnp.float32) * 0.02,
        "b_in": jax.random.normal(k_bin, (hidden_dim,), dtype=jnp.float32) * 0.02,
        "a_logit": jax.random.normal(k_a, (hidden_dim,), dtype=jnp.float32),
        "w_lin": jax.random.normal(k_wl, (hidden_dim, num_lanes),
                                   dtype=jnp.float32) * 0.1,
        "b_lin": jax.random.normal(k_bl, (num_lanes,), dtype=jnp.float32) * 0.1,
    }

    pi, lane_preds = lane_aware_probability_learning(x, params)
    jax.block_until_ready((pi, lane_preds))

    pi_ref, pred_ref = reference_forward(x, params)
    assert pi.shape == (B, T, num_lanes) and lane_preds.shape == (B, T)
    assert jnp.allclose(pi, pi_ref, atol=1e-5, rtol=1e-5)
    assert jnp.array_equal(lane_preds, pred_ref)

    print("KERNEL_OK")
</pallas_src>

<mosaic_0001>
module attributes {stable_mosaic.version = 11 : i64} {
  func.func @fused_kernel(%arg0: i32, %arg1: memref<8x8x3072xf32, #tpu.memory_space<vmem>>, %arg2: memref<3072x128xf32, #tpu.memory_space<vmem>>, %arg3: memref<1x128xf32, #tpu.memory_space<vmem>>, %arg4: memref<1x128xf32, #tpu.memory_space<vmem>>, %arg5: memref<128x128xf32, #tpu.memory_space<vmem>>, %arg6: memref<1x128xf32, #tpu.memory_space<vmem>>, %arg7: memref<8x8x128xf32, #tpu.memory_space<vmem>>, %arg8: memref<64x128xf32, #tpu.memory_space<vmem>>) attributes {dimension_semantics = [#tpu.dimension_semantics<parallel>], iteration_bounds = array<i64: 2>, scalar_prefetch = 0 : i64, scratch_operands = 1 : i64, tpu.core_type = #tpu.core_type<tc>, window_params = [{transform_indices = @transform_0, window_bounds = array<i64: 8, 8, 3072>}, {pipeline_mode = #tpu.pipeline_mode<synchronous>, transform_indices = @transform_1, window_bounds = array<i64: 3072, 128>}, {pipeline_mode = #tpu.pipeline_mode<synchronous>, transform_indices = @transform_2, window_bounds = array<i64: 1, 128>}, {pipeline_mode = #tpu.pipeline_mode<synchronous>, transform_indices = @transform_3, window_bounds = array<i64: 1, 128>}, {pipeline_mode = #tpu.pipeline_mode<synchronous>, transform_indices = @transform_4, window_bounds = array<i64: 128, 128>}, {pipeline_mode = #tpu.pipeline_mode<synchronous>, transform_indices = @transform_5, window_bounds = array<i64: 1, 128>}, {transform_indices = @transform_6, window_bounds = array<i64: 8, 8, 128>}]} {
    %c0 = arith.constant 0 : index
    %c0_0 = arith.constant 0 : index
    %c0_1 = arith.constant 0 : index
    %0 = vector.load %arg1[%c0, %c0_0, %c0_1] : memref<8x8x3072xf32, #tpu.memory_space<vmem>>, vector<8x8x3072xf32>
    %1 = vector.shape_cast %0 : vector<8x8x3072xf32> to vector<64x3072xf32>
    %c0_2 = arith.constant 0 : index
    %c0_3 = arith.constant 0 : index
    %2 = vector.load %arg2[%c0_2, %c0_3] : memref<3072x128xf32, #tpu.memory_space<vmem>>, vector<3072x128xf32>
    %cst = arith.constant dense<0.000000e+00> : vector<64x128xf32>
    %3 = tpu.matmul %1, %2, %cst {dimension_numbers = #tpu.dot_dimension_numbers<[1], [0], [0], [1], [0, 0, 1, 1], [], []>} : vector<64x3072xf32>, vector<3072x128xf32>, vector<64x128xf32> -> vector<64x128xf32>
    %c0_4 = arith.constant 0 : index
    %c0_5 = arith.constant 0 : index
    %4 = vector.load %arg3[%c0_4, %c0_5] : memref<1x128xf32, #tpu.memory_space<vmem>>, vector<1x128xf32>
    %5 = vector.broadcast %4 : vector<1x128xf32> to vector<64x128xf32>
    %6 = arith.addf %3, %5 : vector<64x128xf32>
    %c0_6 = arith.constant 0 : index
    %c0_7 = arith.constant 0 : index
    %7 = vector.load %arg4[%c0_6, %c0_7] : memref<1x128xf32, #tpu.memory_space<vmem>>, vector<1x128xf32>
    %8 = arith.negf %7 : vector<1x128xf32>
    %9 = math.exp %8 : vector<1x128xf32>
    %cst_8 = arith.constant 1.000000e+00 : f32
    %10 = vector.broadcast %cst_8 : f32 to vector<1x128xf32>
    %11 = arith.addf %10, %9 : vector<1x128xf32>
    %12 = arith.divf %10, %11 : vector<1x128xf32>
    %cst_9 = arith.constant 0.000000e+00 : f32
    %13 = vector.broadcast %cst_9 : f32 to vector<8x128xf32>
    %14 = vector.extract_strided_slice %6 {offsets = [0, 0], sizes = [8, 128], strides = [1, 1]} : vector<64x128xf32> to vector<8x128xf32>
    %15 = vector.broadcast %12 : vector<1x128xf32> to vector<8x128xf32>
    %16 = arith.mulf %15, %13 : vector<8x128xf32>
    %17 = arith.addf %16, %14 : vector<8x128xf32>
    %18 = arith.negf %17 : vector<8x128xf32>
    %19 = math.exp %18 : vector<8x128xf32>
    %cst_10 = arith.constant 1.000000e+00 : f32
    %20 = vector.broadcast %cst_10 : f32 to vector<8x128xf32>
    %21 = arith.addf %20, %19 : vector<8x128xf32>
    %22 = arith.divf %20, %21 : vector<8x128xf32>
    %23 = arith.mulf %17, %22 : vector<8x128xf32>
    %c0_11 = arith.constant 0 : index
    %c0_12 = arith.constant 0 : index
    %24 = vector.load %arg8[%c0_11, %c0_12] : memref<64x128xf32, #tpu.memory_space<vmem>>, vector<8x128xf32>
    tpu.vector_store %arg8[%c0_11, %c0_12], %23 {strides = array<i32>} : memref<64x128xf32, #tpu.memory_space<vmem>>, vector<8x128xf32>,
    %25 = vector.extract_strided_slice %6 {offsets = [8, 0], sizes = [8, 128], strides = [1, 1]} : vector<64x128xf32> to vector<8x128xf32>
    %26 = vector.broadcast %12 : vector<1x128xf32> to vector<8x128xf32>
    %27 = arith.mulf %26, %17 : vector<8x128xf32>
    %28 = arith.addf %27, %25 : vector<8x128xf32>
    %29 = arith.negf %28 : vector<8x128xf32>
    %30 = math.exp %29 : vector<8x128xf32>
    %cst_13 = arith.constant 1.000000e+00 : f32
    %31 = vector.broadcast %cst_13 : f32 to vector<8x128xf32>
    %32 = arith.addf %31, %30 : vector<8x128xf32>
    %33 = arith.divf %31, %32 : vector<8x128xf32>
    %34 = arith.mulf %28, %33 : vector<8x128xf32>
    %c8 = arith.constant 8 : index
    %c0_14 = arith.constant 0 : index
    %35 = vector.load %arg8[%c8, %c0_14] : memref<64x128xf32, #tpu.memory_space<vmem>>, vector<8x128xf32>
    tpu.vector_store %arg8[%c8, %c0_14], %34 {strides = array<i32>} : memref<64x128xf32, #tpu.memory_space<vmem>>, vector<8x128xf32>,
    %36 = vector.extract_strided_slice %6 {offsets = [16, 0], sizes = [8, 128], strides = [1, 1]} : vector<64x128xf32> to vector<8x128xf32>
    %37 = vector.broadcast %12 : vector<1x128xf32> to vector<8x128xf32>
    %38 = arith.mulf %37, %28 : vector<8x128xf32>
    %39 = arith.addf %38, %36 : vector<8x128xf32>
    %40 = arith.negf %39 : vector<8x128xf32>
    %41 = math.exp %40 : vector<8x128xf32>
    %cst_15 = arith.constant 1.000000e+00 : f32
    %42 = vector.broadcast %cst_15 : f32 to vector<8x128xf32>
    %43 = arith.addf %42, %41 : vector<8x128xf32>
    %44 = arith.divf %42, %43 : vector<8x128xf32>
    %45 = arith.mulf %39, %44 : vector<8x128xf32>
    %c16 = arith.constant 16 : index
    %c0_16 = arith.constant 0 : index
    %46 = vector.load %arg8[%c16, %c0_16] : memref<64x128xf32, #tpu.memory_space<vmem>>, vector<8x128xf32>
    tpu.vector_store %arg8[%c16, %c0_16], %45 {strides = array<i32>} : memref<64x128xf32, #tpu.memory_space<vmem>>, vector<8x128xf32>,
    %47 = vector.extract_strided_slice %6 {offsets = [24, 0], sizes = [8, 128], strides = [1, 1]} : vector<64x128xf32> to vector<8x128xf32>
    %48 = vector.broadcast %12 : vector<1x128xf32> to vector<8x128xf32>
    %49 = arith.mulf %48, %39 : vector<8x128xf32>
    %50 = arith.addf %49, %47 : vector<8x128xf32>
    %51 = arith.negf %50 : vector<8x128xf32>
    %52 = math.exp %51 : vector<8x128xf32>
    %cst_17 = arith.constant 1.000000e+00 : f32
    %53 = vector.broadcast %cst_17 : f32 to vector<8x128xf32>
    %54 = arith.addf %53, %52 : vector<8x128xf32>
    %55 = arith.divf %53, %54 : vector<8x128xf32>
    %56 = arith.mulf %50, %55 : vector<8x128xf32>
    %c24 = arith.constant 24 : index
    %c0_18 = arith.constant 0 : index
    %57 = vector.load %arg8[%c24, %c0_18] : memref<64x128xf32, #tpu.memory_space<vmem>>, vector<8x128xf32>
    tpu.vector_store %arg8[%c24, %c0_18], %56 {strides = array<i32>} : memref<64x128xf32, #tpu.memory_space<vmem>>, vector<8x128xf32>,
    %58 = vector.extract_strided_slice %6 {offsets = [32, 0], sizes = [8, 128], strides = [1, 1]} : vector<64x128xf32> to vector<8x128xf32>
    %59 = vector.broadcast %12 : vector<1x128xf32> to vector<8x128xf32>
    %60 = arith.mulf %59, %50 : vector<8x128xf32>
    %61 = arith.addf %60, %58 : vector<8x128xf32>
    %62 = arith.negf %61 : vector<8x128xf32>
    %63 = math.exp %62 : vector<8x128xf32>
    %cst_19 = arith.constant 1.000000e+00 : f32
    %64 = vector.broadcast %cst_19 : f32 to vector<8x128xf32>
    %65 = arith.addf %64, %63 : vector<8x128xf32>
    %66 = arith.divf %64, %65 : vector<8x128xf32>
    %67 = arith.mulf %61, %66 : vector<8x128xf32>
    %c32 = arith.constant 32 : index
    %c0_20 = arith.constant 0 : index
    %68 = vector.load %arg8[%c32, %c0_20] : memref<64x128xf32, #tpu.memory_space<vmem>>, vector<8x128xf32>
    tpu.vector_store %arg8[%c32, %c0_20], %67 {strides = array<i32>} : memref<64x128xf32, #tpu.memory_space<vmem>>, vector<8x128xf32>,
    %69 = vector.extract_strided_slice %6 {offsets = [40, 0], sizes = [8, 128], strides = [1, 1]} : vector<64x128xf32> to vector<8x128xf32>
    %70 = vector.broadcast %12 : vector<1x128xf32> to vector<8x128xf32>
    %71 = arith.mulf %70, %61 : vector<8x128xf32>
    %72 = arith.addf %71, %69 : vector<8x128xf32>
    %73 = arith.negf %72 : vector<8x128xf32>
    %74 = math.exp %73 : vector<8x128xf32>
    %cst_21 = arith.constant 1.000000e+00 : f32
    %75 = vector.broadcast %cst_21 : f32 to vector<8x128xf32>
    %76 = arith.addf %75, %74 : vector<8x128xf32>
    %77 = arith.divf %75, %76 : vector<8x128xf32>
    %78 = arith.mulf %72, %77 : vector<8x128xf32>
    %c40 = arith.constant 40 : index
    %c0_22 = arith.constant 0 : index
    %79 = vector.load %arg8[%c40, %c0_22] : memref<64x128xf32, #tpu.memory_space<vmem>>, vector<8x128xf32>
    tpu.vector_store %arg8[%c40, %c0_22], %78 {strides = array<i32>} : memref<64x128xf32, #tpu.memory_space<vmem>>, vector<8x128xf32>,
    %80 = vector.extract_strided_slice %6 {offsets = [48, 0], sizes = [8, 128], strides = [1, 1]} : vector<64x128xf32> to vector<8x128xf32>
    %81 = vector.broadcast %12 : vector<1x128xf32> to vector<8x128xf32>
    %82 = arith.mulf %81, %72 : vector<8x128xf32>
    %83 = arith.addf %82, %80 : vector<8x128xf32>
    %84 = arith.negf %83 : vector<8x128xf32>
    %85 = math.exp %84 : vector<8x128xf32>
    %cst_23 = arith.constant 1.000000e+00 : f32
    %86 = vector.broadcast %cst_23 : f32 to vector<8x128xf32>
    %87 = arith.addf %86, %85 : vector<8x128xf32>
    %88 = arith.divf %86, %87 : vector<8x128xf32>
    %89 = arith.mulf %83, %88 : vector<8x128xf32>
    %c48 = arith.constant 48 : index
    %c0_24 = arith.constant 0 : index
    %90 = vector.load %arg8[%c48, %c0_24] : memref<64x128xf32, #tpu.memory_space<vmem>>, vector<8x128xf32>
    tpu.vector_store %arg8[%c48, %c0_24], %89 {strides = array<i32>} : memref<64x128xf32, #tpu.memory_space<vmem>>, vector<8x128xf32>,
    %91 = vector.extract_strided_slice %6 {offsets = [56, 0], sizes = [8, 128], strides = [1, 1]} : vector<64x128xf32> to vector<8x128xf32>
    %92 = vector.broadcast %12 : vector<1x128xf32> to vector<8x128xf32>
    %93 = arith.mulf %92, %83 : vector<8x128xf32>
    %94 = arith.addf %93, %91 : vector<8x128xf32>
    %95 = arith.negf %94 : vector<8x128xf32>
    %96 = math.exp %95 : vector<8x128xf32>
    %cst_25 = arith.constant 1.000000e+00 : f32
    %97 = vector.broadcast %cst_25 : f32 to vector<8x128xf32>
    %98 = arith.addf %97, %96 : vector<8x128xf32>
    %99 = arith.divf %97, %98 : vector<8x128xf32>
    %100 = arith.mulf %94, %99 : vector<8x128xf32>
    %c56 = arith.constant 56 : index
    %c0_26 = arith.constant 0 : index
    %101 = vector.load %arg8[%c56, %c0_26] : memref<64x128xf32, #tpu.memory_space<vmem>>, vector<8x128xf32>
    tpu.vector_store %arg8[%c56, %c0_26], %100 {strides = array<i32>} : memref<64x128xf32, #tpu.memory_space<vmem>>, vector<8x128xf32>,
    %c0_27 = arith.constant 0 : index
    %c0_28 = arith.constant 0 : index
    %102 = vector.load %arg8[%c0_27, %c0_28] : memref<64x128xf32, #tpu.memory_space<vmem>>, vector<64x128xf32>
    %c0_29 = arith.constant 0 : index
    %c0_30 = arith.constant 0 : index
    %103 = vector.load %arg5[%c0_29, %c0_30] : memref<128x128xf32, #tpu.memory_space<vmem>>, vector<128x128xf32>
    %cst_31 = arith.constant dense<0.000000e+00> : vector<64x128xf32>
    %104 = tpu.matmul %102, %103, %cst_31 {dimension_numbers = #tpu.dot_dimension_numbers<[1], [0], [0], [1], [0, 0, 1, 1], [], []>} : vector<64x128xf32>, vector<128x128xf32>, vector<64x128xf32> -> vector<64x128xf32>
    %c0_32 = arith.constant 0 : index
    %c0_33 = arith.constant 0 : index
    %105 = vector.load %arg6[%c0_32, %c0_33] : memref<1x128xf32, #tpu.memory_space<vmem>>, vector<1x128xf32>
    %106 = vector.broadcast %105 : vector<1x128xf32> to vector<64x128xf32>
    %107 = arith.addf %104, %106 : vector<64x128xf32>
    %cst_34 = arith.constant dense<0xFF800000> : vector<64xf32>
    %108 = vector.multi_reduction <maximumf>, %107, %cst_34 [1] : vector<64x128xf32> to vector<64xf32>
    %109 = vector.shape_cast %108 : vector<64xf32> to vector<64x1xf32>
    %110 = vector.broadcast %109 : vector<64x1xf32> to vector<64x128xf32>
    %111 = arith.subf %107, %110 : vector<64x128xf32>
    %112 = math.exp %111 : vector<64x128xf32>
    %cst_35 = arith.constant dense<0.000000e+00> : vector<64xf32>
    %113 = vector.multi_reduction <add>, %112, %cst_35 [1] : vector<64x128xf32> to vector<64xf32>
    %114 = vector.shape_cast %113 : vector<64xf32> to vector<64x1xf32>
    %cst_36 = arith.constant 1.000000e+00 : f32
    %115 = vector.broadcast %cst_36 : f32 to vector<64x1xf32>
    %116 = arith.divf %115, %114 : vector<64x1xf32>
    %117 = vector.broadcast %116 : vector<64x1xf32> to vector<64x128xf32>
    %118 = arith.mulf %112, %117 : vector<64x128xf32>
    %119 = vector.shape_cast %118 : vector<64x128xf32> to vector<8x8x128xf32>
    %c0_37 = arith.constant 0 : index
    %c0_38 = arith.constant 0 : index
    %c0_39 = arith.constant 0 : index
    %120 = vector.load %arg7[%c0_37, %c0_38, %c0_39] : memref<8x8x128xf32, #tpu.memory_space<vmem>>, vector<8x8x128xf32>
    tpu.vector_store %arg7[%c0_37, %c0_38, %c0_39], %119 {strides = array<i32>} : memref<8x8x128xf32, #tpu.memory_space<vmem>>, vector<8x8x128xf32>,
    return
  }
  func.func @transform_0(%arg0: i32) -> (i32, i32, i32) {
    %c0_i32 = arith.constant 0 : i32
    %c0_i32_0 = arith.constant 0 : i32
    %c0_i32_1 = arith.constant 0 : i32
    return %c0_i32, %arg0, %c0_i32_0 : i32, i32, i32
  }
  func.func @transform_1(%arg0: i32) -> (i32, i32) {
    %c0_i32 = arith.constant 0 : i32
    %c0_i32_0 = arith.constant 0 : i32
    %c0_i32_1 = arith.constant 0 : i32
    return %c0_i32, %c0_i32_0 : i32, i32
  }
  func.func @transform_2(%arg0: i32) -> (i32, i32) {
    %c0_i32 = arith.constant 0 : i32
    %c0_i32_0 = arith.constant 0 : i32
    %c0_i32_1 = arith.constant 0 : i32
    return %c0_i32, %c0_i32_0 : i32, i32
  }
  func.func @transform_3(%arg0: i32) -> (i32, i32) {
    %c0_i32 = arith.constant 0 : i32
    %c0_i32_0 = arith.constant 0 : i32
    %c0_i32_1 = arith.constant 0 : i32
    return %c0_i32, %c0_i32_0 : i32, i32
  }
  func.func @transform_4(%arg0: i32) -> (i32, i32) {
    %c0_i32 = arith.constant 0 : i32
    %c0_i32_0 = arith.constant 0 : i32
    %c0_i32_1 = arith.constant 0 : i32
    return %c0_i32, %c0_i32_0 : i32, i32
  }
  func.func @transform_5(%arg0: i32) -> (i32, i32) {
    %c0_i32 = arith.constant 0 : i32
    %c0_i32_0 = arith.constant 0 : i32
    %c0_i32_1 = arith.constant 0 : i32
    return %c0_i32, %c0_i32_0 : i32, i32
  }
  func.func @transform_6(%arg0: i32) -> (i32, i32, i32) {
    %c0_i32 = arith.constant 0 : i32
    %c0_i32_0 = arith.constant 0 : i32
    %c0_i32_1 = arith.constant 0 : i32
    return %c0_i32, %arg0, %c0_i32_0 : i32, i32, i32
  }
}

</mosaic_0001>

<llo_original>
// kernel: tpu_custom_call.1
$region0: #{tpu_custom_call.1}
  #allocation0 [shape = 'u32[]', space=smem, size = 0x4, offset = 0x4, fixed_abs, tag = 'smem constant byte address 0x4 - core index']
  #allocation1 [shape = 'u32[144,128]{1,0:T(1,128)}', space=vmem, size = 0x12000, scoped, tag = 'internal scratch']
  #allocation2 [shape = 'f32[64,128]{1,0:T(8,128)}', space=vmem, size = 0x8000, scoped, tag = 'scratch operand']
  %s0 = inlined_call_operand.hbm [shape: f32[8,16,3072], index: 0, kind: input, shape index: {}]
  %s1 = inlined_call_operand.hbm [shape: f32[3072,128], index: 1, kind: input, shape index: {}]
  %s2 = inlined_call_operand.hbm [shape: f32[1,128], index: 2, kind: input, shape index: {}]
  %s3 = inlined_call_operand.hbm [shape: f32[1,128], index: 3, kind: input, shape index: {}]
  %s4 = inlined_call_operand.hbm [shape: f32[128,128], index: 4, kind: input, shape index: {}]
  %s5 = inlined_call_operand.hbm [shape: f32[1,128], index: 5, kind: input, shape index: {}]
  %s6 = inlined_call_operand.hbm [shape: f32[8,16,128], index: 6, kind: output, shape index: {}]
  %s7 = sld [smem:[#allocation0]]
  $region81: #{tpu_custom_call.1} parent=0
    _
  %s9 = ssub.s32 1, %s7
  %s10 = scalar_select 0, %s9, %s7
  $region1: #{tpu_custom_call.1} parent=0
    #allocation3 [shape = 'u8[1572864]{0}', space=vmem, size = 0x180000, scoped, tag = 'input window, operand 0']
    #allocation4 [shape = 's32[2]{0}', space=sflag, size = 0x8, scoped, tag = 'scoped memory for tpu_custom_call.1']
    #allocation5 [shape = 's32[2]{0}', space=sflag, size = 0x8, scoped, tag = 'scoped memory for tpu_custom_call.1']
    #allocation6 [shape = 'u8[1572864]{0}', space=vmem, size = 0x180000, scoped, tag = 'input window, operand 1, single buffered']
    #allocation7 [shape = 's32[1]{0}', space=sflag, size = 0x4, scoped, tag = 'scoped memory for tpu_custom_call.1']
    #allocation8 [shape = 'u8[512]{0}', space=vmem, size = 0x400, scoped, tag = 'input window, operand 2, single buffered']
    #allocation9 [shape = 'u8[512]{0}', space=vmem, size = 0x400, scoped, tag = 'input window, operand 3, single buffered']
    #allocation10 [shape = 's32[1]{0}', space=sflag, size = 0x4, scoped, tag = 'scoped memory for tpu_custom_call.1']
    #allocation11 [shape = 'u8[65536]{0}', space=vmem, size = 0x10000, scoped, tag = 'input window, operand 4, single buffered']
    #allocation12 [shape = 'u8[512]{0}', space=vmem, size = 0x400, scoped, tag = 'input window, operand 5, single buffered']
    #allocation13 [shape = 's32[1]{0}', space=sflag, size = 0x4, scoped, tag = 'scoped memory for tpu_custom_call.1']
    #allocation14 [shape = 'u8[65536]{0}', space=vmem, size = 0x10000, scoped, tag = 'output window, operand 0']
    %11 = vsyncpa [#allocation4], 0
    %s12 = scalar_lea.sflag [#allocation4], 1
    %13 = vsyncpa %s12, 0
    %14 = vsyncpa [#allocation7], 0
    %15 = vsyncpa [#allocation10], 0
    %16 = vsyncpa [#allocation13], 0
    %17 = vsyncpa [#allocation5], 0
    %s18 = scalar_lea.sflag [#allocation5], 1
    %19 = vsyncpa %s18, 0
    loop: start=0, step=1, limit=4
    $region2: #{tpu_custom_call.1} parent=1 // loop_pre_header
      _
    $region3: #{tpu_custom_call.1} parent=1 // loop_header
      %s21 = sphi 0, %s25
      %p22 = scmp.ge.s32.totalorder %s21, 4
      %s31 = sphi 0, %s33
      %s34 = sphi 0, %s31
      %s35 = sphi 0, %s34
      %s51 = sphi 0, %s35
      %s55 = sphi 0, %s55
      %s57 = sphi 0, %s55
      %s58 = sphi 0, %s57
      %s72 = sphi 0, %s58
      %s76 = sphi 0, %s76
      %s78 = sphi 0, %s76
      %s79 = sphi 0, %s78
      %s93 = sphi 0, %s79
      %s97 = sphi 0, %s97
      %s99 = sphi 0, %s97
      %s100 = sphi 0, %s99
      %s114 = sphi 0, %s100
      %s118 = sphi 0, %s118
      %s120 = sphi 0, %s118
      %s121 = sphi 0, %s120
      %s135 = sphi 0, %s121
      %s139 = sphi 0, %s139
      %s141 = sphi 0, %s139
      %s142 = sphi 0, %s141
      %s156 = sphi 0, %s142
      %s162 = sphi 0, %s164
      %s165 = sphi 0, %s162
      %s166 = sphi 0, %s165
      %s182 = sphi 0, %s166
    $region4: #{tpu_custom_call.1} parent=1 // loop_header_branch
      %24 = sbr.rel (%p22) target = $region8
    $region5: #{tpu_custom_call.1} parent=1 // loop_body
      %s26 = ssub.s32 %s21, 1
      %s27 = ssub.s32 %s21, 2
      %s28 = sadd.s32 %s21, 1
      %s29 = ssub.s32 %s21, %s28
      %p30 = scmp.eq.s32.totalorder %s29, 0
      %s32 = sadd.s32 %s31, 1
      %s33 = scalar_select %p30, %s31, %s32
      %p36 = pneg %p30
      %p37 = scmp.eq.s32.totalorder %s21, 1
      %p38 = por %p36, %p37
      %p39 = scmp.ne.s32.totalorder %s31, %s34
      %p40 = scmp.eq.s32.totalorder %s21, 0
      %p41 = por %p39, %p40
      %p42 = scmp.ne.s32.totalorder %s31, %s34
      %p43 = scmp.eq.s32.totalorder %s26, 1
      %p44 = por %p42, %p43
      %p45 = scmp.ne.s32.totalorder %s34, %s35
      %p46 = scmp.eq.s32.totalorder %s26, 0
      %p47 = por %p45, %p46
      %p48 = scmp.ne.s32.totalorder %s34, %s35
      %p49 = scmp.eq.s32.totalorder %s27, 1
      %p50 = por %p48, %p49
      %p52 = scmp.ne.s32.totalorder %s35, %s51
      %p53 = scmp.eq.s32.totalorder %s27, 0
      %p54 = por %p52, %p53
      %s56 = sadd.s32 %s55, 1
      %p59 = scmp.eq.s32.totalorder %s21, 1
      %p60 = scmp.ne.s32.totalorder %s55, %s57
      %p61 = scmp.eq.s32.totalorder %s21, 0
      %p62 = por %p60, %p61
      %p63 = scmp.ne.s32.totalorder %s55, %s57
      %p64 = scmp.eq.s32.totalorder %s26, 1
      %p65 = por %p63, %p64
      %p66 = scmp.ne.s32.totalorder %s57, %s58
      %p67 = scmp.eq.s32.totalorder %s26, 0
      %p68 = por %p66, %p67
      %p69 = scmp.ne.s32.totalorder %s57, %s58
      %p70 = scmp.eq.s32.totalorder %s27, 1
      %p71 = por %p69, %p70
      %p73 = scmp.ne.s32.totalorder %s58, %s72
      %p74 = scmp.eq.s32.totalorder %s27, 0
      %p75 = por %p73, %p74
      %s77 = sadd.s32 %s76, 1
      %p80 = scmp.eq.s32.totalorder %s21, 1
      %p81 = scmp.ne.s32.totalorder %s76, %s78
      %p82 = scmp.eq.s32.totalorder %s21, 0
      %p83 = por %p81, %p82
      %p84 = scmp.ne.s32.totalorder %s76, %s78
      %p85 = scmp.eq.s32.totalorder %s26, 1
      %p86 = por %p84, %p85
      %p87 = scmp.ne.s32.totalorder %s78, %s79
      %p88 = scmp.eq.s32.totalorder %s26, 0
      %p89 = por %p87, %p88
      %p90 = scmp.ne.s32.totalorder %s78, %s79
      %p91 = scmp.eq.s32.totalorder %s27, 1
      %p92 = por %p90, %p91
      %p94 = scmp.ne.s32.totalorder %s79, %s93
      %p95 = scmp.eq.s32.totalorder %s27, 0
      %p96 = por %p94, %p95
      %s98 = sadd.s32 %s97, 1
      %p101 = scmp.eq.s32.totalorder %s21, 1
      %p102 = scmp.ne.s32.totalorder %s97, %s99
      %p103 = scmp.eq.s32.totalorder %s21, 0
      %p104 = por %p102, %p103
      %p105 = scmp.ne.s32.totalorder %s97, %s99
      %p106 = scmp.eq.s32.totalorder %s26, 1
      %p107 = por %p105, %p106
      %p108 = scmp.ne.s32.totalorder %s99, %s100
      %p109 = scmp.eq.s32.totalorder %s26, 0
      %p110 = por %p108, %p109
      %p111 = scmp.ne.s32.totalorder %s99, %s100
      %p112 = scmp.eq.s32.totalorder %s27, 1
      %p113 = por %p111, %p112
      %p115 = scmp.ne.s32.totalorder %s100, %s114
      %p116 = scmp.eq.s32.totalorder %s27, 0
      %p117 = por %p115, %p116
      %s119 = sadd.s32 %s118, 1
      %p122 = scmp.eq.s32.totalorder %s21, 1
      %p123 = scmp.ne.s32.totalorder %s118, %s120
      %p124 = scmp.eq.s32.totalorder %s21, 0
      %p125 = por %p123, %p124
      %p126 = scmp.ne.s32.totalorder %s118, %s120
      %p127 = scmp.eq.s32.totalorder %s26, 1
      %p128 = por %p126, %p127
      %p129 = scmp.ne.s32.totalorder %s120, %s121
      %p130 = scmp.eq.s32.totalorder %s26, 0
      %p131 = por %p129, %p130
      %p132 = scmp.ne.s32.totalorder %s120, %s121
      %p133 = scmp.eq.s32.totalorder %s27, 1
      %p134 = por %p132, %p133
      %p136 = scmp.ne.s32.totalorder %s121, %s135
      %p137 = scmp.eq.s32.totalorder %s27, 0
      %p138 = por %p136, %p137
      %s140 = sadd.s32 %s139, 1
      %p143 = scmp.eq.s32.totalorder %s21, 1
      %p144 = scmp.ne.s32.totalorder %s139, %s141
      %p145 = scmp.eq.s32.totalorder %s21, 0
      %p146 = por %p144, %p145
      %p147 = scmp.ne.s32.totalorder %s139, %s141
      %p148 = scmp.eq.s32.totalorder %s26, 1
      %p149 = por %p147, %p148
      %p150 = scmp.ne.s32.totalorder %s141, %s142
      %p151 = scmp.eq.s32.totalorder %s26, 0
      %p152 = por %p150, %p151
      %p153 = scmp.ne.s32.totalorder %s141, %s142
      %p154 = scmp.eq.s32.totalorder %s27, 1
      %p155 = por %p153, %p154
      %p157 = scmp.ne.s32.totalorder %s142, %s156
      %p158 = scmp.eq.s32.totalorder %s27, 0
      %p159 = por %p157, %p158
      %s160 = ssub.s32 %s21, %s28
      %p161 = scmp.eq.s32.totalorder %s160, 0
      %s163 = sadd.s32 %s162, 1
      %s164 = scalar_select %p161, %s162, %s163
      %p167 = pneg %p161
      %p168 = scmp.eq.s32.totalorder %s21, 1
      %p169 = por %p167, %p168
      %p170 = scmp.ne.s32.totalorder %s162, %s165
      %p171 = scmp.eq.s32.totalorder %s21, 0
      %p172 = por %p170, %p171
      %p173 = scmp.ne.s32.totalorder %s162, %s165
      %p174 = scmp.eq.s32.totalorder %s26, 1
      %p175 = por %p173, %p174
      %p176 = scmp.ne.s32.totalorder %s165, %s166
      %p177 = scmp.eq.s32.totalorder %s26, 0
      %p178 = por %p176, %p177
      %p179 = scmp.ne.s32.totalorder %s165, %s166
      %p180 = scmp.eq.s32.totalorder %s27, 1
      %p181 = por %p179, %p180
      %p183 = scmp.ne.s32.totalorder %s166, %s182
      %p184 = scmp.eq.s32.totalorder %s27, 0
      %p185 = por %p183, %p184
      %p186 = scmp.le.s32.totalorder 1, %s21
      %p187 = scmp.lt.s32.totalorder %s21, 3
      %p188 = pnand %p186, %p187
      %p189 = pneg %p188
      // Predicated region
      $region9: #{tpu_custom_call.1} parent=5 // pred_check
        _
      $region10: #{tpu_custom_call.1} parent=5 // pred_check_branch
        %191 = sbr.rel (%p188) target = $region12
      $region11: #{tpu_custom_call.1} parent=5 // pred_region
        %s192 = ssub.s32 %s21, 1
        // Predicated region
        $region13: #{tpu_custom_call.1} parent=11 // pred_check
          %p193 = pneg %p68
        $region14: #{tpu_custom_call.1} parent=11 // pred_check_branch
          %195 = sbr.rel (%p193) target = $region16
        $region15: #{tpu_custom_call.1} parent=11 // pred_region
          %s197 = ssub.s32 49152, 49152
          %198 = vsyncadd [#allocation7], %s197
          %s199 = sshll.u32 [#allocation6], 4
          %s200 = int_to_ptr.vmem [resolvable:$true] %s199
          %205 = dma.hbm_to_vmem [thread:$0]  %s1, 49152, %s200, [#allocation7], 128, 128, 8
        $region16: #{tpu_custom_call.1} parent=11 // pred_fallthru
          _
        // Predicated region
        $region17: #{tpu_custom_call.1} parent=11 // pred_check
          %p206 = pneg %p89
        $region18: #{tpu_custom_call.1} parent=11 // pred_check_branch
          %208 = sbr.rel (%p206) target = $region20
        $region19: #{tpu_custom_call.1} parent=11 // pred_region
          %s210 = ssub.s32 16, 16
          %211 = vsyncadd [#allocation7], %s210
          %s213 = sshll.u32 [#allocation8], 4
          %s214 = int_to_ptr.vmem [resolvable:$true] %s213
          %216 = dma.hbm_to_vmem [thread:$0]  %s2, 16, %s214, [#allocation7]
        $region20: #{tpu_custom_call.1} parent=11 // pred_fallthru
          _
        // Predicated region
        $region21: #{tpu_custom_call.1} parent=11 // pred_check
          %p217 = pneg %p110
        $region22: #{tpu_custom_call.1} parent=11 // pred_check_branch
          %219 = sbr.rel (%p217) target = $region24
        $region23: #{tpu_custom_call.1} parent=11 // pred_region
          %s221 = ssub.s32 16, 16
          %222 = vsyncadd [#allocation10], %s221
          %s224 = sshll.u32 [#allocation9], 4
          %s225 = int_to_ptr.vmem [resolvable:$true] %s224
          %227 = dma.hbm_to_vmem [thread:$0]  %s3, 16, %s225, [#allocation10]
        $region24: #{tpu_custom_call.1} parent=11 // pred_fallthru
          _
        // Predicated region
        $region25: #{tpu_custom_call.1} parent=11 // pred_check
          %p228 = pneg %p131
        $region26: #{tpu_custom_call.1} parent=11 // pred_check_branch
          %230 = sbr.rel (%p228) target = $region28
        $region27: #{tpu_custom_call.1} parent=11 // pred_region
          %s232 = ssub.s32 2048, 2048
          %233 = vsyncadd [#allocation10], %s232
          %s234 = sshll.u32 [#allocation11], 4
          %s235 = int_to_ptr.vmem [resolvable:$true] %s234
          %240 = dma.hbm_to_vmem [thread:$0]  %s4, 2048, %s235, [#allocation10], 128, 128, 8
        $region28: #{tpu_custom_call.1} parent=11 // pred_fallthru
          _
        // Predicated region
        $region29: #{tpu_custom_call.1} parent=11 // pred_check
          %p241 = pneg %p152
        $region30: #{tpu_custom_call.1} parent=11 // pred_check_branch
          %243 = sbr.rel (%p241) target = $region32
        $region31: #{tpu_custom_call.1} parent=11 // pred_region
          %s245 = ssub.s32 16, 16
          %246 = vsyncadd [#allocation13], %s245
          %s248 = sshll.u32 [#allocation12], 4
          %s249 = int_to_ptr.vmem [resolvable:$true] %s248
          %251 = dma.hbm_to_vmem [thread:$0]  %s5, 16, %s249, [#allocation13]
        $region32: #{tpu_custom_call.1} parent=11 // pred_fallthru
          _
      $region12: #{tpu_custom_call.1} parent=5 // pred_fallthru
        _
      %p252 = scmp.lt.s32.totalorder %s21, 2
      // Predicated region
      $region33: #{tpu_custom_call.1} parent=5 // pred_check
        %p253 = pneg %p252
      $region34: #{tpu_custom_call.1} parent=5 // pred_check_branch
        %255 = sbr.rel (%p253) target = $region36
      $region35: #{tpu_custom_call.1} parent=5 // pred_region
        // Predicated region
        $region37: #{tpu_custom_call.1} parent=35 // pred_check
          %p256 = pneg %p41
        $region38: #{tpu_custom_call.1} parent=35 // pred_check_branch
          %258 = sbr.rel (%p256) target = $region40
        $region39: #{tpu_custom_call.1} parent=35 // pred_region
          %s259 = sand.u32 %s31, 1
          %s260 = scalar_lea.sflag [#allocation4], %s259
          %s261 = sand.u32 %s31, 1
          %s262 = smul.addr %s261, 1536
          %s263 = scalar_lea.vmem [#allocation3], %s262
          %s265 = ssub.s32 24576, 24576
          %266 = vsyncadd %s260, %s265
          %s267 = smul.addr %s21, 24
          %s268 = smul.addr %s267, 128
          %s269 = scalar_lea.hbm %s0, %s268
          %s270 = sshll.u32 %s263, 4
          %s271 = int_to_ptr.vmem [resolvable:$true] %s270
          %276 = dma.hbm_to_vmem [thread:$0]  %s269, 24576, %s271, %s260, 6144, 3072, 192
        $region40: #{tpu_custom_call.1} parent=35 // pred_fallthru
          _
      $region36: #{tpu_custom_call.1} parent=5 // pred_fallthru
        _
      %p277 = scmp.le.s32.totalorder 1, %s21
      %p278 = scmp.lt.s32.totalorder %s21, 3
      %p279 = pnand %p277, %p278
      %p280 = pneg %p279
      // Predicated region
      $region41: #{tpu_custom_call.1} parent=5 // pred_check
        _
      $region42: #{tpu_custom_call.1} parent=5 // pred_check_branch
        %282 = sbr.rel (%p279) target = $region44
      $region43: #{tpu_custom_call.1} parent=5 // pred_region
        %s283 = ssub.s32 %s21, 1
        %s284 = sand.u32 %s34, 1
        %s285 = scalar_lea.sflag [#allocation4], %s284
        %s286 = sand.u32 %s34, 1
        %s287 = smul.addr %s286, 1536
        %s288 = scalar_lea.vmem [#allocation3], %s287
        // Predicated region
        $region45: #{tpu_custom_call.1} parent=43 // pred_check
          %p289 = pneg %p47
        $region46: #{tpu_custom_call.1} parent=43 // pred_check_branch
          %291 = sbr.rel (%p289) target = $region48
        $region47: #{tpu_custom_call.1} parent=43 // pred_region
          %292 = dma.done %s285, 24576
        $region48: #{tpu_custom_call.1} parent=43 // pred_fallthru
          _
        // Predicated region
        $region49: #{tpu_custom_call.1} parent=43 // pred_check
          %p293 = pneg %p68
        $region50: #{tpu_custom_call.1} parent=43 // pred_check_branch
          %295 = sbr.rel (%p293) target = $region52
        $region51: #{tpu_custom_call.1} parent=43 // pred_region
          %296 = dma.done [#allocation7], 49152
        $region52: #{tpu_custom_call.1} parent=43 // pred_fallthru
          _
        // Predicated region
        $region53: #{tpu_custom_call.1} parent=43 // pred_check
          %p297 = pneg %p89
        $region54: #{tpu_custom_call.1} parent=43 // pred_check_branch
          %299 = sbr.rel (%p297) target = $region56
        $region55: #{tpu_custom_call.1} parent=43 // pred_region
          %300 = dma.done [#allocation7], 16
        $region56: #{tpu_custom_call.1} parent=43 // pred_fallthru
          _
        // Predicated region
        $region57: #{tpu_custom_call.1} parent=43 // pred_check
          %p301 = pneg %p110
        $region58: #{tpu_custom_call.1} parent=43 // pred_check_branch
          %303 = sbr.rel (%p301) target = $region60
        $region59: #{tpu_custom_call.1} parent=43 // pred_region
          %304 = dma.done [#allocation10], 16
        $region60: #{tpu_custom_call.1} parent=43 // pred_fallthru
          _
        // Predicated region
        $region61: #{tpu_custom_call.1} parent=43 // pred_check
          %p305 = pneg %p131
        $region62: #{tpu_custom_call.1} parent=43 // pred_check_branch
          %307 = sbr.rel (%p305) target = $region64
        $region63: #{tpu_custom_call.1} parent=43 // pred_region
          %308 = dma.done [#allocation10], 2048
        $region64: #{tpu_custom_call.1} parent=43 // pred_fallthru
          _
        // Predicated region
        $region65: #{tpu_custom_call.1} parent=43 // pred_check
          %p309 = pneg %p152
        $region66: #{tpu_custom_call.1} parent=43 // pred_check_branch
          %311 = sbr.rel (%p309) target = $region68
        $region67: #{tpu_custom_call.1} parent=43 // pred_region
          %312 = dma.done [#allocation13], 16
        $region68: #{tpu_custom_call.1} parent=43 // pred_fallthru
          _
        %s313 = sand.u32 %s34, 1
        %s314 = scalar_lea.sflag [#allocation4], %s313
        %s315 = sand.u32 %s34, 1
        %s316 = smul.addr %s315, 1536
        %s317 = scalar_lea.vmem [#allocation3], %s316
        %p318 = pneg %p47
        %p319 = pneg %p44
        %p320 = pneg %p68
        %p321 = pneg %p65
        %p322 = pneg %p89
        %p323 = pneg %p86
        %p324 = pneg %p110
        %p325 = pneg %p107
        %p326 = pneg %p131
        %p327 = pneg %p128
        %p328 = pneg %p152
        %p329 = pneg %p149
        %p330 = pneg %p178
        %p331 = pneg %p175
        %s332 = sand.u32 %s165, 1
        %s333 = scalar_lea.sflag [#allocation5], %s332
        %s334 = sand.u32 %s165, 1
        %s335 = smul.addr %s334, 64
        %s336 = scalar_lea.vmem [#allocation14], %s335
        %v337 = vld [vmem:[%s288] sm:$0xff]
        %v338 = vld [vmem:[%s288 + $0x8] sm:$0xff]
        %v339 = vld [vmem:[%s288 + $0x10] sm:$0xff]
        %v340 = vld [vmem:[%s288 + $0x18] sm:$0xff]
        %v341 = vld [vmem:[%s288 + $0x20] sm:$0xff]
        %v342 = vld [vmem:[%s288 + $0x28] sm:$0xff]
        %v343 = vld [vmem:[%s288 + $0x30] sm:$0xff]
        %v344 = vld [vmem:[%s288 + $0x38] sm:$0xff]
        %v345 = vld [vmem:[%s288 + $0x40] sm:$0xff]
        %v346 = vld [vmem:[%s288 + $0x48] sm:$0xff]
        %v347 = vld [vmem:[%s288 + $0x50] sm:$0xff]
        %v348 = vld [vmem:[%s288 + $0x58] sm:$0xff]
        %v349 = vld [vmem:[%s288 + $0x60] sm:$0xff]
        %v350 = vld [vmem:[%s288 + $0x68] sm:$0xff]
        %v351 = vld [vmem:[%s288 + $0x70] sm:$0xff]
        %v352 = vld [vmem:[%s288 + $0x78] sm:$0xff]
        %v353 = vld [vmem:[%s288 + $0x80] sm:$0xff]
        %v354 = vld [vmem:[%s288 + $0x88] sm:$0xff]
        %v355 = vld [vmem:[%s288 + $0x90] sm:$0xff]
        %v356 = vld [vmem:[%s288 + $0x98] sm:$0xff]
        %v357 = vld [vmem:[%s288 + $0xa0] sm:$0xff]
        %v358 = vld [vmem:[%s288 + $0xa8] sm:$0xff]
        %v359 = vld [vmem:[%s288 + $0xb0] sm:$0xff]
        %v360 = vld [vmem:[%s288 + $0xb8] sm:$0xff]
        %v361 = vld [vmem:[%s288 + $0xc0] sm:$0xff]
        %v362 = vld [vmem:[%s288 + $0xc8] sm:$0xff]
        %v363 = vld [vmem:[%s288 + $0xd0] sm:$0xff]
        %v364 = vld [vmem:[%s288 + $0xd8] sm:$0xff]
        %v365 = vld [vmem:[%s288 + $0xe0] sm:$0xff]
        %v366 = vld [vmem:[%s288 + $0xe8] sm:$0xff]
        %v367 = vld [vmem:[%s288 + $0xf0] sm:$0xff]
        %v368 = vld [vmem:[%s288 + $0xf8] sm:$0xff]
        %v369 = vld [vmem:[%s288 + $0x100] sm:$0xff]
        %v370 = vld [vmem:[%s288 + $0x108] sm:$0xff]
        %v371 = vld [vmem:[%s288 + $0x110] sm:$0xff]
        %v372 = vld [vmem:[%s288 + $0x118] sm:$0xff]
        %v373 = vld [vmem:[%s288 + $0x120] sm:$0xff]
        %v374 = vld [vmem:[%s288 + $0x128] sm:$0xff]
        %v375 = vld [vmem:[%s288 + $0x130] sm:$0xff]
        %v376 = vld [vmem:[%s288 + $0x138] sm:$0xff]
        %v377 = vld [vmem:[%s288 + $0x140] sm:$0xff]
        %v378 = vld [vmem:[%s288 + $0x148] sm:$0xff]
        %v379 = vld [vmem:[%s288 + $0x150] sm:$0xff]
        %v380 = vld [vmem:[%s288 + $0x158] sm:$0xff]
        %v381 = vld [vmem:[%s288 + $0x160] sm:$0xff]
        %v382 = vld [vmem:[%s288 + $0x168] sm:$0xff]
        %v383 = vld [vmem:[%s288 + $0x170] sm:$0xff]
        %v384 = vld [vmem:[%s288 + $0x178] sm:$0xff]
        %v385 = vld [vmem:[%s288 + $0x180] sm:$0xff]
        %v386 = vld [vmem:[%s288 + $0x188] sm:$0xff]
        %v387 = vld [vmem:[%s288 + $0x190] sm:$0xff]
        %v388 = vld [vmem:[%s288 + $0x198] sm:$0xff]
        %v389 = vld [vmem:[%s288 + $0x1a0] sm:$0xff]
        %v390 = vld [vmem:[%s288 + $0x1a8] sm:$0xff]
        %v391 = vld [vmem:[%s288 + $0x1b0] sm:$0xff]
        %v392 = vld [vmem:[%s288 + $0x1b8] sm:$0xff]
        %v393 = vld [vmem:[%s288 + $0x1c0] sm:$0xff]
        %v394 = vld [vmem:[%s288 + $0x1c8] sm:$0xff]
        %v395 = vld [vmem:[%s288 + $0x1d0] sm:$0xff]
        %v396 = vld [vmem:[%s288 + $0x1d8] sm:$0xff]
        %v397 = vld [vmem:[%s288 + $0x1e0] sm:$0xff]
        %v398 = vld [vmem:[%s288 + $0x1e8] sm:$0xff]
        %v399 = vld [vmem:[%s288 + $0x1f0] sm:$0xff]
        %v400 = vld [vmem:[%s288 + $0x1f8] sm:$0xff]
        %v401 = vld [vmem:[%s288 + $0x200] sm:$0xff]
        %v402 = vld [vmem:[%s288 + $0x208] sm:$0xff]
        %v403 = vld [vmem:[%s288 + $0x210] sm:$0xff]
        %v404 = vld [vmem:[%s288 + $0x218] sm:$0xff]
        %v405 = vld [vmem:[%s288 + $0x220] sm:$0xff]
        %v406 = vld [vmem:[%s288 + $0x228] sm:$0xff]
        %v407 = vld [vmem:[%s288 + $0x230] sm:$0xff]
        %v408 = vld [vmem:[%s288 + $0x238] sm:$0xff]
        %v409 = vld [vmem:[%s288 + $0x240] sm:$0xff]
        %v410 = vld [vmem:[%s288 + $0x248] sm:$0xff]
        %v411 = vld [vmem:[%s288 + $0x250] sm:$0xff]
        %v412 = vld [vmem:[%s288 + $0x258] sm:$0xff]
        %v413 = vld [vmem:[%s288 + $0x260] sm:$0xff]
        %v414 = vld [vmem:[%s288 + $0x268] sm:$0xff]
        %v415 = vld [vmem:[%s288 + $0x270] sm:$0xff]
        %v416 = vld [vmem:[%s288 + $0x278] sm:$0xff]
        %v417 = vld [vmem:[%s288 + $0x280] sm:$0xff]
        %v418 = vld [vmem:[%s288 + $0x288] sm:$0xff]
        %v419 = vld [vmem:[%s288 + $0x290] sm:$0xff]
        %v420 = vld [vmem:[%s288 + $0x298] sm:$0xff]
        %v421 = vld [vmem:[%s288 + $0x2a0] sm:$0xff]
        %v422 = vld [vmem:[%s288 + $0x2a8] sm:$0xff]
        %v423 = vld [vmem:[%s288 + $0x2b0] sm:$0xff]
        %v424 = vld [vmem:[%s288 + $0x2b8] sm:$0xff]
        %v425 = vld [vmem:[%s288 + $0x2c0] sm:$0xff]
        %v426 = vld [vmem:[%s288 + $0x2c8] sm:$0xff]
        %v427 = vld [vmem:[%s288 + $0x2d0] sm:$0xff]
        %v428 = vld [vmem:[%s288 + $0x2d8] sm:$0xff]
        %v429 = vld [vmem:[%s288 + $0x2e0] sm:$0xff]
        %v430 = vld [vmem:[%s288 + $0x2e8] sm:$0xff]
        %v431 = vld [vmem:[%s288 + $0x2f0] sm:$0xff]
        %v432 = vld [vmem:[%s288 + $0x2f8] sm:$0xff]
        %v433 = vld [vmem:[%s288 + $0x300] sm:$0xff]
        %v434 = vld [vmem:[%s288 + $0x308] sm:$0xff]
        %v435 = vld [vmem:[%s288 + $0x310] sm:$0xff]
        %v436 = vld [vmem:[%s288 + $0x318] sm:$0xff]
        %v437 = vld [vmem:[%s288 + $0x320] sm:$0xff]
        %v438 = vld [vmem:[%s288 + $0x328] sm:$0xff]
        %v439 = vld [vmem:[%s288 + $0x330] sm:$0xff]
        %v440 = vld [vmem:[%s288 + $0x338] sm:$0xff]
        %v441 = vld [vmem:[%s288 + $0x340] sm:$0xff]
        %v442 = vld [vmem:[%s288 + $0x348] sm:$0xff]
        %v443 = vld [vmem:[%s288 + $0x350] sm:$0xff]
        %v444 = vld [vmem:[%s288 + $0x358] sm:$0xff]
        %v445 = vld [vmem:[%s288 + $0x360] sm:$0xff]
        %v446 = vld [vmem:[%s288 + $0x368] sm:$0xff]
        %v447 = vld [vmem:[%s288 + $0x370] sm:$0xff]
        %v448 = vld [vmem:[%s288 + $0x378] sm:$0xff]
        %v449 = vld [vmem:[%s288 + $0x380] sm:$0xff]
        %v450 = vld [vmem:[%s288 + $0x388] sm:$0xff]
        %v451 = vld [vmem:[%s288 + $0x390] sm:$0xff]
        %v452 = vld [vmem:[%s288 + $0x398] sm:$0xff]
        %v453 = vld [vmem:[%s288 + $0x3a0] sm:$0xff]
        %v454 = vld [vmem:[%s288 + $0x3a8] sm:$0xff]
        %v455 = vld [vmem:[%s288 + $0x3b0] sm:$0xff]
        %v456 = vld [vmem:[%s288 + $0x3b8] sm:$0xff]
        %v457 = vld [vmem:[%s288 + $0x3c0] sm:$0xff]
        %v458 = vld [vmem:[%s288 + $0x3c8] sm:$0xff]
        %v459 = vld [vmem:[%s288 + $0x3d0] sm:$0xff]
        %v460 = vld [vmem:[%s288 + $0x3d8] sm:$0xff]
        %v461 = vld [vmem:[%s288 + $0x3e0] sm:$0xff]
        %v462 = vld [vmem:[%s288 + $0x3e8] sm:$0xff]
        %v463 = vld [vmem:[%s288 + $0x3f0] sm:$0xff]
        %v464 = vld [vmem:[%s288 + $0x3f8] sm:$0xff]
        %v465 = vld [vmem:[%s288 + $0x400] sm:$0xff]
        %v466 = vld [vmem:[%s288 + $0x408] sm:$0xff]
        %v467 = vld [vmem:[%s288 + $0x410] sm:$0xff]
        %v468 = vld [vmem:[%s288 + $0x418] sm:$0xff]
        %v469 = vld [vmem:[%s288 + $0x420] sm:$0xff]
        %v470 = vld [vmem:[%s288 + $0x428] sm:$0xff]
        %v471 = vld [vmem:[%s288 + $0x430] sm:$0xff]
        %v472 = vld [vmem:[%s288 + $0x438] sm:$0xff]
        %v473 = vld [vmem:[%s288 + $0x440] sm:$0xff]
        %v474 = vld [vmem:[%s288 + $0x448] sm:$0xff]
        %v475 = vld [vmem:[%s288 + $0x450] sm:$0xff]
        %v476 = vld [vmem:[%s288 + $0x458] sm:$0xff]
        %v477 = vld [vmem:[%s288 + $0x460] sm:$0xff]
        %v478 = vld [vmem:[%s288 + $0x468] sm:$0xff]
        %v479 = vld [vmem:[%s288 + $0x470] sm:$0xff]
        %v480 = vld [vmem:[%s288 + $0x478] sm:$0xff]
        %v481 = vld [vmem:[%s288 + $0x480] sm:$0xff]
        %v482 = vld [vmem:[%s288 + $0x488] sm:$0xff]
        %v483 = vld [vmem:[%s288 + $0x490] sm:$0xff]
        %v484 = vld [vmem:[%s288 + $0x498] sm:$0xff]
        %v485 = vld [vmem:[%s288 + $0x4a0] sm:$0xff]
        %v486 = vld [vmem:[%s288 + $0x4a8] sm:$0xff]
        %v487 = vld [vmem:[%s288 + $0x4b0] sm:$0xff]
        %v488 = vld [vmem:[%s288 + $0x4b8] sm:$0xff]
        %v489 = vld [vmem:[%s288 + $0x4c0] sm:$0xff]
        %v490 = vld [vmem:[%s288 + $0x4c8] sm:$0xff]
        %v491 = vld [vmem:[%s288 + $0x4d0] sm:$0xff]
        %v492 = vld [vmem:[%s288 + $0x4d8] sm:$0xff]
        %v493 = vld [vmem:[%s288 + $0x4e0] sm:$0xff]
        %v494 = vld [vmem:[%s288 + $0x4e8] sm:$0xff]
        %v495 = vld [vmem:[%s288 + $0x4f0] sm:$0xff]
        %v496 = vld [vmem:[%s288 + $0x4f8] sm:$0xff]
        %v497 = vld [vmem:[%s288 + $0x500] sm:$0xff]
        %v498 = vld [vmem:[%s288 + $0x508] sm:$0xff]
        %v499 = vld [vmem:[%s288 + $0x510] sm:$0xff]
        %v500 = vld [vmem:[%s288 + $0x518] sm:$0xff]
        %v501 = vld [vmem:[%s288 + $0x520] sm:$0xff]
        %v502 = vld [vmem:[%s288 + $0x528] sm:$0xff]
        %v503 = vld [vmem:[%s288 + $0x530] sm:$0xff]
        %v504 = vld [vmem:[%s288 + $0x538] sm:$0xff]
        %v505 = vld [vmem:[%s288 + $0x540] sm:$0xff]
        %v506 = vld [vmem:[%s288 + $0x548] sm:$0xff]
        %v507 = vld [vmem:[%s288 + $0x550] sm:$0xff]
        %v508 = vld [vmem:[%s288 + $0x558] sm:$0xff]
        %v509 = vld [vmem:[%s288 + $0x560] sm:$0xff]
        %v510 = vld [vmem:[%s288 + $0x568] sm:$0xff]
        %v511 = vld [vmem:[%s288 + $0x570] sm:$0xff]
        %v512 = vld [vmem:[%s288 + $0x578] sm:$0xff]
        %v513 = vld [vmem:[%s288 + $0x580] sm:$0xff]
        %v514 = vld [vmem:[%s288 + $0x588] sm:$0xff]
        %v515 = vld [vmem:[%s288 + $0x590] sm:$0xff]
        %v516 = vld [vmem:[%s288 + $0x598] sm:$0xff]
        %v517 = vld [vmem:[%s288 + $0x5a0] sm:$0xff]
        %v518 = vld [vmem:[%s288 + $0x5a8] sm:$0xff]
        %v519 = vld [vmem:[%s288 + $0x5b0] sm:$0xff]
        %v520 = vld [vmem:[%s288 + $0x5b8] sm:$0xff]
        %v521 = vld [vmem:[%s288 + $0x5c0] sm:$0xff]
        %v522 = vld [vmem:[%s288 + $0x5c8] sm:$0xff]
        %v523 = vld [vmem:[%s288 + $0x5d0] sm:$0xff]
        %v524 = vld [vmem:[%s288 + $0x5d8] sm:$0xff]
        %v525 = vld [vmem:[%s288 + $0x5e0] sm:$0xff]
        %v526 = vld [vmem:[%s288 + $0x5e8] sm:$0xff]
        %v527 = vld [vmem:[%s288 + $0x5f0] sm:$0xff]
        %v528 = vld [vmem:[%s288 + $0x5f8] sm:$0xff]
        %v529 = vld [vmem:[#allocation6] sm:$0xff]
        %v530 = vld [vmem:[#allocation6 + $0x8] sm:$0xff]
        %v531 = vld [vmem:[#allocation6 + $0x10] sm:$0xff]
        %v532 = vld [vmem:[#allocation6 + $0x18] sm:$0xff]
        %v533 = vld [vmem:[#allocation6 + $0x20] sm:$0xff]
        %v534 = vld [vmem:[#allocation6 + $0x28] sm:$0xff]
        %v535 = vld [vmem:[#allocation6 + $0x30] sm:$0xff]
        %v536 = vld [vmem:[#allocation6 + $0x38] sm:$0xff]
        %v537 = vld [vmem:[#allocation6 + $0x40] sm:$0xff]
        %v538 = vld [vmem:[#allocation6 + $0x48] sm:$0xff]
        %v539 = vld [vmem:[#allocation6 + $0x50] sm:$0xff]
        %v540 = vld [vmem:[#allocation6 + $0x58] sm:$0xff]
        %v541 = vld [vmem:[#allocation6 + $0x60] sm:$0xff]
        %v542 = vld [vmem:[#allocation6 + $0x68] sm:$0xff]
        %v543 = vld [vmem:[#allocation6 + $0x70] sm:$0xff]
        %v544 = vld [vmem:[#allocation6 + $0x78] sm:$0xff]
        %v545 = vld [vmem:[#allocation6 + $0x80] sm:$0xff]
        %v546 = vld [vmem:[#allocation6 + $0x88] sm:$0xff]
        %v547 = vld [vmem:[#allocation6 + $0x90] sm:$0xff]
        %v548 = vld [vmem:[#allocation6 + $0x98] sm:$0xff]
        %v549 = vld [vmem:[#allocation6 + $0xa0] sm:$0xff]
        %v550 = vld [vmem:[#allocation6 + $0xa8] sm:$0xff]
        %v551 = vld [vmem:[#allocation6 + $0xb0] sm:$0xff]
        %v552 = vld [vmem:[#allocation6 + $0xb8] sm:$0xff]
        %v553 = vld [vmem:[#allocation6 + $0xc0] sm:$0xff]
        %v554 = vld [vmem:[#allocation6 + $0xc8] sm:$0xff]
        %v555 = vld [vmem:[#allocation6 + $0xd0] sm:$0xff]
        %v556 = vld [vmem:[#allocation6 + $0xd8] sm:$0xff]
        %v557 = vld [vmem:[#allocation6 + $0xe0] sm:$0xff]
        %v558 = vld [vmem:[#allocation6 + $0xe8] sm:$0xff]
        %v559 = vld [vmem:[#allocation6 + $0xf0] sm:$0xff]
        %v560 = vld [vmem:[#allocation6 + $0xf8] sm:$0xff]
        %v561 = vld [vmem:[#allocation6 + $0x100] sm:$0xff]
        %v562 = vld [vmem:[#allocation6 + $0x108] sm:$0xff]
        %v563 = vld [vmem:[#allocation6 + $0x110] sm:$0xff]
        %v564 = vld [vmem:[#allocation6 + $0x118] sm:$0xff]
        %v565 = vld [vmem:[#allocation6 + $0x120] sm:$0xff]
        %v566 = vld [vmem:[#allocation6 + $0x128] sm:$0xff]
        %v567 = vld [vmem:[#allocation6 + $0x130] sm:$0xff]
        %v568 = vld [vmem:[#allocation6 + $0x138] sm:$0xff]
        %v569 = vld [vmem:[#allocation6 + $0x140] sm:$0xff]
        %v570 = vld [vmem:[#allocation6 + $0x148] sm:$0xff]
        %v571 = vld [vmem:[#allocation6 + $0x150] sm:$0xff]
        %v572 = vld [vmem:[#allocation6 + $0x158] sm:$0xff]
        %v573 = vld [vmem:[#allocation6 + $0x160] sm:$0xff]
        %v574 = vld [vmem:[#allocation6 + $0x168] sm:$0xff]
        %v575 = vld [vmem:[#allocation6 + $0x170] sm:$0xff]
        %v576 = vld [vmem:[#allocation6 + $0x178] sm:$0xff]
        %v577 = vld [vmem:[#allocation6 + $0x180] sm:$0xff]
        %v578 = vld [vmem:[#allocation6 + $0x188] sm:$0xff]
        %v579 = vld [vmem:[#allocation6 + $0x190] sm:$0xff]
        %v580 = vld [vmem:[#allocation6 + $0x198] sm:$0xff]
        %v581 = vld [vmem:[#allocation6 + $0x1a0] sm:$0xff]
        %v582 = vld [vmem:[#allocation6 + $0x1a8] sm:$0xff]
        %v583 = vld [vmem:[#allocation6 + $0x1b0] sm:$0xff]
        %v584 = vld [vmem:[#allocation6 + $0x1b8] sm:$0xff]
        %v585 = vld [vmem:[#allocation6 + $0x1c0] sm:$0xff]
        %v586 = vld [vmem:[#allocation6 + $0x1c8] sm:$0xff]
        %v587 = vld [vmem:[#allocation6 + $0x1d0] sm:$0xff]
        %v588 = vld [vmem:[#allocation6 + $0x1d8] sm:$0xff]
        %v589 = vld [vmem:[#allocation6 + $0x1e0] sm:$0xff]
        %v590 = vld [vmem:[#allocation6 + $0x1e8] sm:$0xff]
        %v591 = vld [vmem:[#allocation6 + $0x1f0] sm:$0xff]
        %v592 = vld [vmem:[#allocation6 + $0x1f8] sm:$0xff]
        %v593 = vld [vmem:[#allocation6 + $0x200] sm:$0xff]
        %v594 = vld [vmem:[#allocation6 + $0x208] sm:$0xff]
        %v595 = vld [vmem:[#allocation6 + $0x210] sm:$0xff]
        %v596 = vld [vmem:[#allocation6 + $0x218] sm:$0xff]
        %v597 = vld [vmem:[#allocation6 + $0x220] sm:$0xff]
        %v598 = vld [vmem:[#allocation6 + $0x228] sm:$0xff]
        %v599 = vld [vmem:[#allocation6 + $0x230] sm:$0xff]
        %v600 = vld [vmem:[#allocation6 + $0x238] sm:$0xff]
        %v601 = vld [vmem:[#allocation6 + $0x240] sm:$0xff]
        %v602 = vld [vmem:[#allocation6 + $0x248] sm:$0xff]
        %v603 = vld [vmem:[#allocation6 + $0x250] sm:$0xff]
        %v604 = vld [vmem:[#allocation6 + $0x258] sm:$0xff]
        %v605 = vld [vmem:[#allocation6 + $0x260] sm:$0xff]
        %v606 = vld [vmem:[#allocation6 + $0x268] sm:$0xff]
        %v607 = vld [vmem:[#allocation6 + $0x270] sm:$0xff]
        %v608 = vld [vmem:[#allocation6 + $0x278] sm:$0xff]
        %v609 = vld [vmem:[#allocation6 + $0x280] sm:$0xff]
        %v610 = vld [vmem:[#allocation6 + $0x288] sm:$0xff]
        %v611 = vld [vmem:[#allocation6 + $0x290] sm:$0xff]
        %v612 = vld [vmem:[#allocation6 + $0x298] sm:$0xff]
        %v613 = vld [vmem:[#allocation6 + $0x2a0] sm:$0xff]
        %v614 = vld [vmem:[#allocation6 + $0x2a8] sm:$0xff]
        %v615 = vld [vmem:[#allocation6 + $0x2b0] sm:$0xff]
        %v616 = vld [vmem:[#allocation6 + $0x2b8] sm:$0xff]
        %v617 = vld [vmem:[#allocation6 + $0x2c0] sm:$0xff]
        %v618 = vld [vmem:[#allocation6 + $0x2c8] sm:$0xff]
        %v619 = vld [vmem:[#allocation6 + $0x2d0] sm:$0xff]
        %v620 = vld [vmem:[#allocation6 + $0x2d8] sm:$0xff]
        %v621 = vld [vmem:[#allocation6 + $0x2e0] sm:$0xff]
        %v622 = vld [vmem:[#allocation6 + $0x2e8] sm:$0xff]
        %v623 = vld [vmem:[#allocation6 + $0x2f0] sm:$0xff]
        %v624 = vld [vmem:[#allocation6 + $0x2f8] sm:$0xff]
        %v625 = vld [vmem:[#allocation6 + $0x300] sm:$0xff]
        %v626 = vld [vmem:[#allocation6 + $0x308] sm:$0xff]
        %v627 = vld [vmem:[#allocation6 + $0x310] sm:$0xff]
        %v628 = vld [vmem:[#allocation6 + $0x318] sm:$0xff]
        %v629 = vld [vmem:[#allocation6 + $0x320] sm:$0xff]
        %v630 = vld [vmem:[#allocation6 + $0x328] sm:$0xff]
        %v631 = vld [vmem:[#allocation6 + $0x330] sm:$0xff]
        %v632 = vld [vmem:[#allocation6 + $0x338] sm:$0xff]
        %v633 = vld [vmem:[#allocation6 + $0x340] sm:$0xff]
        %v634 = vld [vmem:[#allocation6 + $0x348] sm:$0xff]
        %v635 = vld [vmem:[#allocation6 + $0x350] sm:$0xff]
        %v636 = vld [vmem:[#allocation6 + $0x358] sm:$0xff]
        %v637 = vld [vmem:[#allocation6 + $0x360] sm:$0xff]
        %v638 = vld [vmem:[#allocation6 + $0x368] sm:$0xff]
        %v639 = vld [vmem:[#allocation6 + $0x370] sm:$0xff]
        %v640 = vld [vmem:[#allocation6 + $0x378] sm:$0xff]
        %v641 = vld [vmem:[#allocation6 + $0x380] sm:$0xff]
        %v642 = vld [vmem:[#allocation6 + $0x388] sm:$0xff]
        %v643 = vld [vmem:[#allocation6 + $0x390] sm:$0xff]
        %v644 = vld [vmem:[#allocation6 + $0x398] sm:$0xff]
        %v645 = vld [vmem:[#allocation6 + $0x3a0] sm:$0xff]
        %v646 = vld [vmem:[#allocation6 + $0x3a8] sm:$0xff]
        %v647 = vld [vmem:[#allocation6 + $0x3b0] sm:$0xff]
        %v648 = vld [vmem:[#allocation6 + $0x3b8] sm:$0xff]
        %v649 = vld [vmem:[#allocation6 + $0x3c0] sm:$0xff]
        %v650 = vld [vmem:[#allocation6 + $0x3c8] sm:$0xff]
        %v651 = vld [vmem:[#allocation6 + $0x3d0] sm:$0xff]
        %v652 = vld [vmem:[#allocation6 + $0x3d8] sm:$0xff]
        %v653 = vld [vmem:[#allocation6 + $0x3e0] sm:$0xff]
        %v654 = vld [vmem:[#allocation6 + $0x3e8] sm:$0xff]
        %v655 = vld [vmem:[#allocation6 + $0x3f0] sm:$0xff]
        %v656 = vld [vmem:[#allocation6 + $0x3f8] sm:$0xff]
        %v657 = vld [vmem:[#allocation6 + $0x400] sm:$0xff]
        %v658 = vld [vmem:[#allocation6 + $0x408] sm:$0xff]
        %v659 = vld [vmem:[#allocation6 + $0x410] sm:$0xff]
        %v660 = vld [vmem:[#allocation6 + $0x418] sm:$0xff]
        %v661 = vld [vmem:[#allocation6 + $0x420] sm:$0xff]
        %v662 = vld [vmem:[#allocation6 + $0x428] sm:$0xff]
        %v663 = vld [vmem:[#allocation6 + $0x430] sm:$0xff]
        %v664 = vld [vmem:[#allocation6 + $0x438] sm:$0xff]
        %v665 = vld [vmem:[#allocation6 + $0x440] sm:$0xff]
        %v666 = vld [vmem:[#allocation6 + $0x448] sm:$0xff]
        %v667 = vld [vmem:[#allocation6 + $0x450] sm:$0xff]
        %v668 = vld [vmem:[#allocation6 + $0x458] sm:$0xff]
        %v669 = vld [vmem:[#allocation6 + $0x460] sm:$0xff]
        %v670 = vld [vmem:[#allocation6 + $0x468] sm:$0xff]
        %v671 = vld [vmem:[#allocation6 + $0x470] sm:$0xff]
        %v672 = vld [vmem:[#allocation6 + $0x478] sm:$0xff]
        %v673 = vld [vmem:[#allocation6 + $0x480] sm:$0xff]
        %v674 = vld [vmem:[#allocation6 + $0x488] sm:$0xff]
        %v675 = vld [vmem:[#allocation6 + $0x490] sm:$0xff]
        %v676 = vld [vmem:[#allocation6 + $0x498] sm:$0xff]
        %v677 = vld [vmem:[#allocation6 + $0x4a0] sm:$0xff]
        %v678 = vld [vmem:[#allocation6 + $0x4a8] sm:$0xff]
        %v679 = vld [vmem:[#allocation6 + $0x4b0] sm:$0xff]
        %v680 = vld [vmem:[#allocation6 + $0x4b8] sm:$0xff]
        %v681 = vld [vmem:[#allocation6 + $0x4c0] sm:$0xff]
        %v682 = vld [vmem:[#allocation6 + $0x4c8] sm:$0xff]
        %v683 = vld [vmem:[#allocation6 + $0x4d0] sm:$0xff]
        %v684 = vld [vmem:[#allocation6 + $0x4d8] sm:$0xff]
        %v685 = vld [vmem:[#allocation6 + $0x4e0] sm:$0xff]
        %v686 = vld [vmem:[#allocation6 + $0x4e8] sm:$0xff]
        %v687 = vld [vmem:[#allocation6 + $0x4f0] sm:$0xff]
        %v688 = vld [vmem:[#allocation6 + $0x4f8] sm:$0xff]
        %v689 = vld [vmem:[#allocation6 + $0x500] sm:$0xff]
        %v690 = vld [vmem:[#allocation6 + $0x508] sm:$0xff]
        %v691 = vld [vmem:[#allocation6 + $0x510] sm:$0xff]
        %v692 = vld [vmem:[#allocation6 + $0x518] sm:$0xff]
        %v693 = vld [vmem:[#allocation6 + $0x520] sm:$0xff]
        %v694 = vld [vmem:[#allocation6 + $0x528] sm:$0xff]
        %v695 = vld [vmem:[#allocation6 + $0x530] sm:$0xff]
        %v696 = vld [vmem:[#allocation6 + $0x538] sm:$0xff]
        %v697 = vld [vmem:[#allocation6 + $0x540] sm:$0xff]
        %v698 = vld [vmem:[#allocation6 + $0x548] sm:$0xff]
        %v699 = vld [vmem:[#allocation6 + $0x550] sm:$0xff]
        %v700 = vld [vmem:[#allocation6 + $0x558] sm:$0xff]
        %v701 = vld [vmem:[#allocation6 + $0x560] sm:$0xff]
        %v702 = vld [vmem:[#allocation6 + $0x568] sm:$0xff]
        %v703 = vld [vmem:[#allocation6 + $0x570] sm:$0xff]
        %v704 = vld [vmem:[#allocation6 + $0x578] sm:$0xff]
        %v705 = vld [vmem:[#allocation6 + $0x580] sm:$0xff]
        %v706 = vld [vmem:[#allocation6 + $0x588] sm:$0xff]
        %v707 = vld [vmem:[#allocation6 + $0x590] sm:$0xff]
        %v708 = vld [vmem:[#allocation6 + $0x598] sm:$0xff]
        %v709 = vld [vmem:[#allocation6 + $0x5a0] sm:$0xff]
        %v710 = vld [vmem:[#allocation6 + $0x5a8] sm:$0xff]
        %v711 = vld [vmem:[#allocation6 + $0x5b0] sm:$0xff]
        %v712 = vld [vmem:[#allocation6 + $0x5b8] sm:$0xff]
        %v713 = vld [vmem:[#allocation6 + $0x5c0] sm:$0xff]
        %v714 = vld [vmem:[#allocation6 + $0x5c8] sm:$0xff]
        %v715 = vld [vmem:[#allocation6 + $0x5d0] sm:$0xff]
        %v716 = vld [vmem:[#allocation6 + $0x5d8] sm:$0xff]
        %v717 = vld [vmem:[#allocation6 + $0x5e0] sm:$0xff]
        %v718 = vld [vmem:[#allocation6 + $0x5e8] sm:$0xff]
        %v719 = vld [vmem:[#allocation6 + $0x5f0] sm:$0xff]
        %v720 = vld [vmem:[#allocation6 + $0x5f8] sm:$0xff]
        %v721 = vld [vmem:[#allocation6 + $0x600] sm:$0xff]
        %v722 = vld [vmem:[#allocation6 + $0x608] sm:$0xff]
        %v723 = vld [vmem:[#allocation6 + $0x610] sm:$0xff]
        %v724 = vld [vmem:[#allocation6 + $0x618] sm:$0xff]
        %v725 = vld [vmem:[#allocation6 + $0x620] sm:$0xff]
        %v726 = vld [vmem:[#allocation6 + $0x628] sm:$0xff]
        %v727 = vld [vmem:[#allocation6 + $0x630] sm:$0xff]
        %v728 = vld [vmem:[#allocation6 + $0x638] sm:$0xff]
        %v729 = vld [vmem:[#allocation6 + $0x640] sm:$0xff]
        %v730 = vld [vmem:[#allocation6 + $0x648] sm:$0xff]
        %v731 = vld [vmem:[#allocation6 + $0x650] sm:$0xff]
        %v732 = vld [vmem:[#allocation6 + $0x658] sm:$0xff]
        %v733 = vld [vmem:[#allocation6 + $0x660] sm:$0xff]
        %v734 = vld [vmem:[#allocation6 + $0x668] sm:$0xff]
        %v735 = vld [vmem:[#allocation6 + $0x670] sm:$0xff]
        %v736 = vld [vmem:[#allocation6 + $0x678] sm:$0xff]
        %v737 = vld [vmem:[#allocation6 + $0x680] sm:$0xff]
        %v738 = vld [vmem:[#allocation6 + $0x688] sm:$0xff]
        %v739 = vld [vmem:[#allocation6 + $0x690] sm:$0xff]
        %v740 = vld [vmem:[#allocation6 + $0x698] sm:$0xff]
        %v741 = vld [vmem:[#allocation6 + $0x6a0] sm:$0xff]
        %v742 = vld [vmem:[#allocation6 + $0x6a8] sm:$0xff]
        %v743 = vld [vmem:[#allocation6 + $0x6b0] sm:$0xff]
        %v744 = vld [vmem:[#allocation6 + $0x6b8] sm:$0xff]
        %v745 = vld [vmem:[#allocation6 + $0x6c0] sm:$0xff]
        %v746 = vld [vmem:[#allocation6 + $0x6c8] sm:$0xff]
        %v747 = vld [vmem:[#allocation6 + $0x6d0] sm:$0xff]
        %v748 = vld [vmem:[#allocation6 + $0x6d8] sm:$0xff]
        %v749 = vld [vmem:[#allocation6 + $0x6e0] sm:$0xff]
        %v750 = vld [vmem:[#allocation6 + $0x6e8] sm:$0xff]
        %v751 = vld [vmem:[#allocation6 + $0x6f0] sm:$0xff]
        %v752 = vld [vmem:[#allocation6 + $0x6f8] sm:$0xff]
        %v753 = vld [vmem:[#allocation6 + $0x700] sm:$0xff]
        %v754 = vld [vmem:[#allocation6 + $0x708] sm:$0xff]
        %v755 = vld [vmem:[#allocation6 + $0x710] sm:$0xff]
        %v756 = vld [vmem:[#allocation6 + $0x718] sm:$0xff]
        %v757 = vld [vmem:[#allocation6 + $0x720] sm:$0xff]
        %v758 = vld [vmem:[#allocation6 + $0x728] sm:$0xff]
        %v759 = vld [vmem:[#allocation6 + $0x730] sm:$0xff]
        %v760 = vld [vmem:[#allocation6 + $0x738] sm:$0xff]
        %v761 = vld [vmem:[#allocation6 + $0x740] sm:$0xff]
        %v762 = vld [vmem:[#allocation6 + $0x748] sm:$0xff]
        %v763 = vld [vmem:[#allocation6 + $0x750] sm:$0xff]
        %v764 = vld [vmem:[#allocation6 + $0x758] sm:$0xff]
        %v765 = vld [vmem:[#allocation6 + $0x760] sm:$0xff]
        %v766 = vld [vmem:[#allocation6 + $0x768] sm:$0xff]
        %v767 = vld [vmem:[#allocation6 + $0x770] sm:$0xff]
        %v768 = vld [vmem:[#allocation6 + $0x778] sm:$0xff]
        %v769 = vld [vmem:[#allocation6 + $0x780] sm:$0xff]
        %v770 = vld [vmem:[#allocation6 + $0x788] sm:$0xff]
        %v771 = vld [vmem:[#allocation6 + $0x790] sm:$0xff]
        %v772 = vld [vmem:[#allocation6 + $0x798] sm:$0xff]
        %v773 = vld [vmem:[#allocation6 + $0x7a0] sm:$0xff]
        %v774 = vld [vmem:[#allocation6 + $0x7a8] sm:$0xff]
        %v775 = vld [vmem:[#allocation6 + $0x7b0] sm:$0xff]
        %v776 = vld [vmem:[#allocation6 + $0x7b8] sm:$0xff]
        %v777 = vld [vmem:[#allocation6 + $0x7c0] sm:$0xff]
        %v778 = vld [vmem:[#allocation6 + $0x7c8] sm:$0xff]
        %v779 = vld [vmem:[#allocation6 + $0x7d0] sm:$0xff]
        %v780 = vld [vmem:[#allocation6 + $0x7d8] sm:$0xff]
        %v781 = vld [vmem:[#allocation6 + $0x7e0] sm:$0xff]
        %v782 = vld [vmem:[#allocation6 + $0x7e8] sm:$0xff]
        %v783 = vld [vmem:[#allocation6 + $0x7f0] sm:$0xff]
        %v784 = vld [vmem:[#allocation6 + $0x7f8] sm:$0xff]
        %v785 = vld [vmem:[#allocation6 + $0x800] sm:$0xff]
        %v786 = vld [vmem:[#allocation6 + $0x808] sm:$0xff]
        %v787 = vld [vmem:[#allocation6 + $0x810] sm:$0xff]
        %v788 = vld [vmem:[#allocation6 + $0x818] sm:$0xff]
        %v789 = vld [vmem:[#allocation6 + $0x820] sm:$0xff]
        %v790 = vld [vmem:[#allocation6 + $0x828] sm:$0xff]
        %v791 = vld [vmem:[#allocation6 + $0x830] sm:$0xff]
        %v792 = vld [vmem:[#allocation6 + $0x838] sm:$0xff]
        %v793 = vld [vmem:[#allocation6 + $0x840] sm:$0xff]
        %v794 = vld [vmem:[#allocation6 + $0x848] sm:$0xff]
        %v795 = vld [vmem:[#allocation6 + $0x850] sm:$0xff]
        %v796 = vld [vmem:[#allocation6 + $0x858] sm:$0xff]
        %v797 = vld [vmem:[#allocation6 + $0x860] sm:$0xff]
        %v798 = vld [vmem:[#allocation6 + $0x868] sm:$0xff]
        %v799 = vld [vmem:[#allocation6 + $0x870] sm:$0xff]
        %v800 = vld [vmem:[#allocation6 + $0x878] sm:$0xff]
        %v801 = vld [vmem:[#allocation6 + $0x880] sm:$0xff]
        %v802 = vld [vmem:[#allocation6 + $0x888] sm:$0xff]
        %v803 = vld [vmem:[#allocation6 + $0x890] sm:$0xff]
        %v804 = vld [vmem:[#allocation6 + $0x898] sm:$0xff]
        %v805 = vld [vmem:[#allocation6 + $0x8a0] sm:$0xff]
        %v806 = vld [vmem:[#allocation6 + $0x8a8] sm:$0xff]
        %v807 = vld [vmem:[#allocation6 + $0x8b0] sm:$0xff]
        %v808 = vld [vmem:[#allocation6 + $0x8b8] sm:$0xff]
        %v809 = vld [vmem:[#allocation6 + $0x8c0] sm:$0xff]
        %v810 = vld [vmem:[#allocation6 + $0x8c8] sm:$0xff]
        %v811 = vld [vmem:[#allocation6 + $0x8d0] sm:$0xff]
        %v812 = vld [vmem:[#allocation6 + $0x8d8] sm:$0xff]
        %v813 = vld [vmem:[#allocation6 + $0x8e0] sm:$0xff]
        %v814 = vld [vmem:[#allocation6 + $0x8e8] sm:$0xff]
        %v815 = vld [vmem:[#allocation6 + $0x8f0] sm:$0xff]
        %v816 = vld [vmem:[#allocation6 + $0x8f8] sm:$0xff]
        %v817 = vld [vmem:[#allocation6 + $0x900] sm:$0xff]
        %v818 = vld [vmem:[#allocation6 + $0x908] sm:$0xff]
        %v819 = vld [vmem:[#allocation6 + $0x910] sm:$0xff]
        %v820 = vld [vmem:[#allocation6 + $0x918] sm:$0xff]
        %v821 = vld [vmem:[#allocation6 + $0x920] sm:$0xff]
        %v822 = vld [vmem:[#allocation6 + $0x928] sm:$0xff]
        %v823 = vld [vmem:[#allocation6 + $0x930] sm:$0xff]
        %v824 = vld [vmem:[#allocation6 + $0x938] sm:$0xff]
        %v825 = vld [vmem:[#allocation6 + $0x940] sm:$0xff]
        %v826 = vld [vmem:[#allocation6 + $0x948] sm:$0xff]
        %v827 = vld [vmem:[#allocation6 + $0x950] sm:$0xff]
        %v828 = vld [vmem:[#allocation6 + $0x958] sm:$0xff]
        %v829 = vld [vmem:[#allocation6 + $0x960] sm:$0xff]
        %v830 = vld [vmem:[#allocation6 + $0x968] sm:$0xff]
        %v831 = vld [vmem:[#allocation6 + $0x970] sm:$0xff]
        %v832 = vld [vmem:[#allocation6 + $0x978] sm:$0xff]
        %v833 = vld [vmem:[#allocation6 + $0x980] sm:$0xff]
        %v834 = vld [vmem:[#allocation6 + $0x988] sm:$0xff]
        %v835 = vld [vmem:[#allocation6 + $0x990] sm:$0xff]
        %v836 = vld [vmem:[#allocation6 + $0x998] sm:$0xff]
        %v837 = vld [vmem:[#allocation6 + $0x9a0] sm:$0xff]
        %v838 = vld [vmem:[#allocation6 + $0x9a8] sm:$0xff]
        %v839 = vld [vmem:[#allocation6 + $0x9b0] sm:$0xff]
        %v840 = vld [vmem:[#allocation6 + $0x9b8] sm:$0xff]
        %v841 = vld [vmem:[#allocation6 + $0x9c0] sm:$0xff]
        %v842 = vld [vmem:[#allocation6 + $0x9c8] sm:$0xff]
        %v843 = vld [vmem:[#allocation6 + $0x9d0] sm:$0xff]
        %v844 = vld [vmem:[#allocation6 + $0x9d8] sm:$0xff]
        %v845 = vld [vmem:[#allocation6 + $0x9e0] sm:$0xff]
        %v846 = vld [vmem:[#allocation6 + $0x9e8] sm:$0xff]
        %v847 = vld [vmem:[#allocation6 + $0x9f0] sm:$0xff]
        %v848 = vld [vmem:[#allocation6 + $0x9f8] sm:$0xff]
        %v849 = vld [vmem:[#allocation6 + $0xa00] sm:$0xff]
        %v850 = vld [vmem:[#allocation6 + $0xa08] sm:$0xff]
        %v851 = vld [vmem:[#allocation6 + $0xa10] sm:$0xff]
        %v852 = vld [vmem:[#allocation6 + $0xa18] sm:$0xff]
        %v853 = vld [vmem:[#allocation6 + $0xa20] sm:$0xff]
        %v854 = vld [vmem:[#allocation6 + $0xa28] sm:$0xff]
        %v855 = vld [vmem:[#allocation6 + $0xa30] sm:$0xff]
        %v856 = vld [vmem:[#allocation6 + $0xa38] sm:$0xff]
        %v857 = vld [vmem:[#allocation6 + $0xa40] sm:$0xff]
        %v858 = vld [vmem:[#allocation6 + $0xa48] sm:$0xff]
        %v859 = vld [vmem:[#allocation6 + $0xa50] sm:$0xff]
        %v860 = vld [vmem:[#allocation6 + $0xa58] sm:$0xff]
        %v861 = vld [vmem:[#allocation6 + $0xa60] sm:$0xff]
        %v862 = vld [vmem:[#allocation6 + $0xa68] sm:$0xff]
        %v863 = vld [vmem:[#allocation6 + $0xa70] sm:$0xff]
        %v864 = vld [vmem:[#allocation6 + $0xa78] sm:$0xff]
        %v865 = vld [vmem:[#allocation6 + $0xa80] sm:$0xff]
        %v866 = vld [vmem:[#allocation6 + $0xa88] sm:$0xff]
        %v867 = vld [vmem:[#allocation6 + $0xa90] sm:$0xff]
        %v868 = vld [vmem:[#allocation6 + $0xa98] sm:$0xff]
        %v869 = vld [vmem:[#allocation6 + $0xaa0] sm:$0xff]
        %v870 = vld [vmem:[#allocation6 + $0xaa8] sm:$0xff]
        %v871 = vld [vmem:[#allocation6 + $0xab0] sm:$0xff]
        %v872 = vld [vmem:[#allocation6 + $0xab8] sm:$0xff]
        %v873 = vld [vmem:[#allocation6 + $0xac0] sm:$0xff]
        %v874 = vld [vmem:[#allocation6 + $0xac8] sm:$0xff]
        %v875 = vld [vmem:[#allocation6 + $0xad0] sm:$0xff]
        %v876 = vld [vmem:[#allocation6 + $0xad8] sm:$0xff]
        %v877 = vld [vmem:[#allocation6 + $0xae0] sm:$0xff]
        %v878 = vld [vmem:[#allocation6 + $0xae8] sm:$0xff]
        %v879 = vld [vmem:[#allocation6 + $0xaf0] sm:$0xff]
        %v880 = vld [vmem:[#allocation6 + $0xaf8] sm:$0xff]
        %v881 = vld [vmem:[#allocation6 + $0xb00] sm:$0xff]
        %v882 = vld [vmem:[#allocation6 + $0xb08] sm:$0xff]
        %v883 = vld [vmem:[#allocation6 + $0xb10] sm:$0xff]
        %v884 = vld [vmem:[#allocation6 + $0xb18] sm:$0xff]
        %v885 = vld [vmem:[#allocation6 + $0xb20] sm:$0xff]
        %v886 = vld [vmem:[#allocation6 + $0xb28] sm:$0xff]
        %v887 = vld [vmem:[#allocation6 + $0xb30] sm:$0xff]
        %v888 = vld [vmem:[#allocation6 + $0xb38] sm:$0xff]
        %v889 = vld [vmem:[#allocation6 + $0xb40] sm:$0xff]
        %v890 = vld [vmem:[#allocation6 + $0xb48] sm:$0xff]
        %v891 = vld [vmem:[#allocation6 + $0xb50] sm:$0xff]
        %v892 = vld [vmem:[#allocation6 + $0xb58] sm:$0xff]
        %v893 = vld [vmem:[#allocation6 + $0xb60] sm:$0xff]
        %v894 = vld [vmem:[#allocation6 + $0xb68] sm:$0xff]
        %v895 = vld [vmem:[#allocation6 + $0xb70] sm:$0xff]
        %v896 = vld [vmem:[#allocation6 + $0xb78] sm:$0xff]
        %v897 = vld [vmem:[#allocation6 + $0xb80] sm:$0xff]
        %v898 = vld [vmem:[#allocation6 + $0xb88] sm:$0xff]
        %v899 = vld [vmem:[#allocation6 + $0xb90] sm:$0xff]
        %v900 = vld [vmem:[#allocation6 + $0xb98] sm:$0xff]
        %v901 = vld [vmem:[#allocation6 + $0xba0] sm:$0xff]
        %v902 = vld [vmem:[#allocation6 + $0xba8] sm:$0xff]
        %v903 = vld [vmem:[#allocation6 + $0xbb0] sm:$0xff]
        %v904 = vld [vmem:[#allocation6 + $0xbb8] sm:$0xff]
        %v905 = vld [vmem:[#allocation6 + $0xbc0] sm:$0xff]
        %v906 = vld [vmem:[#allocation6 + $0xbc8] sm:$0xff]
        %v907 = vld [vmem:[#allocation6 + $0xbd0] sm:$0xff]
        %v908 = vld [vmem:[#allocation6 + $0xbd8] sm:$0xff]
        %v909 = vld [vmem:[#allocation6 + $0xbe0] sm:$0xff]
        %v910 = vld [vmem:[#allocation6 + $0xbe8] sm:$0xff]
        %v911 = vld [vmem:[#allocation6 + $0xbf0] sm:$0xff]
        %v912 = vld [vmem:[#allocation6 + $0xbf8] sm:$0xff]
        %v913 = vld [vmem:[#allocation8] sm:$0x1]
        %v915 = vlaneseq
        %v916 = vshrl.u32 %v915, 7
        %v917 = vsub.s32 0, %v916
        %v918 = vrot.slane %v913, %v917
        %920 = vmatprep.subr.mxu0 0.0
        %921 = vmatpush1.msra.mxu0 %v529
        %922 = vmatprep.subr.mxu0 0.0
        %923 = vmatpush1.msra.mxu0 %v530
        %924 = vmatprep.subr.mxu0 0.0
        %925 = vmatpush1.msra.mxu0 %v531
        %926 = vmatprep.subr.mxu0 0.0
        %927 = vmatpush1.msra.mxu0 %v532
        %928 = vmatprep.subr.mxu0 0.0
        %929 = vmatpush1.msra.mxu0 %v533
        %930 = vmatprep.subr.mxu0 0.0
        %931 = vmatpush1.msra.mxu0 %v534
        %932 = vmatprep.subr.mxu0 0.0
        %933 = vmatpush1.msra.mxu0 %v535
        %934 = vmatprep.subr.mxu0 0.0
        %935 = vmatpush1.msra.mxu0 %v536
        %936 = vmatprep.subr.mxu0 0.0
        %937 = vmatpush1.msra.mxu0 %v537
        %938 = vmatprep.subr.mxu0 0.0
        %939 = vmatpush1.msra.mxu0 %v538
        %940 = vmatprep.subr.mxu0 0.0
        %941 = vmatpush1.msra.mxu0 %v539
        %942 = vmatprep.subr.mxu0 0.0
        %943 = vmatpush1.msra.mxu0 %v540
        %944 = vmatprep.subr.mxu0 0.0
        %945 = vmatpush1.msra.mxu0 %v541
        %946 = vmatprep.subr.mxu0 0.0
        %947 = vmatpush1.msra.mxu0 %v542
        %948 = vmatprep.subr.mxu0 0.0
        %949 = vmatpush1.msra.mxu0 %v543
        %950 = vmatprep.subr.mxu0 0.0
        %951 = vmatpush1.msra.mxu0 %v544
        %952 = vmatprep.subr.mxu0 0.0
        %953 = vmatpush1.msra.mxu0 %v545
        %954 = vmatprep.subr.mxu0 0.0
        %955 = vmatpush1.msra.mxu0 %v546
        %956 = vmatprep.subr.mxu0 0.0
        %957 = vmatpush1.msra.mxu0 %v547
        %958 = vmatprep.subr.mxu0 0.0
        %959 = vmatpush1.msra.mxu0 %v548
        %960 = vmatprep.subr.mxu0 0.0
        %961 = vmatpush1.msra.mxu0 %v549
        %962 = vmatprep.subr.mxu0 0.0
        %963 = vmatpush1.msra.mxu0 %v550
        %964 = vmatprep.subr.mxu0 0.0
        %965 = vmatpush1.msra.mxu0 %v551
        %966 = vmatprep.subr.mxu0 0.0
        %967 = vmatpush1.msra.mxu0 %v552
        %968 = vmatprep.subr.mxu0 0.0
        %969 = vmatpush1.msra.mxu0 %v553
        %970 = vmatprep.subr.mxu0 0.0
        %971 = vmatpush1.msra.mxu0 %v554
        %972 = vmatprep.subr.mxu0 0.0
        %973 = vmatpush1.msra.mxu0 %v555
        %974 = vmatprep.subr.mxu0 0.0
        %975 = vmatpush1.msra.mxu0 %v556
        %976 = vmatprep.subr.mxu0 0.0
        %977 = vmatpush1.msra.mxu0 %v557
        %978 = vmatprep.subr.mxu0 0.0
        %979 = vmatpush1.msra.mxu0 %v558
        %980 = vmatprep.subr.mxu0 0.0
        %981 = vmatpush1.msra.mxu0 %v559
        %982 = vmatprep.subr.mxu0 0.0
        %983 = vmatpush1.msra.mxu0 %v560
        %984 = vmatprep.mubr.f32.mxu0 %v338
        %985 = vmatmul.mubr.f32.gmra.mrb[0].mxu0 %v337
        %v986 = vpop.f32.mrb[0].mxu0
        %v987 = vadd.f32 %v918, %v986
        %v988 = vpop.f32.mrb[0].mxu0
        %989 = vmatprep.mubr.f32.mxu0 %v362
        %990 = vmatmul.mubr.f32.gmra.mrb[0].mxu0 %v361
        %v991 = vpop.f32.mrb[0].mxu0
        %v992 = vadd.f32 %v918, %v991
        %v993 = vpop.f32.mrb[0].mxu0
        %994 = vmatprep.mubr.f32.mxu0 %v386
        %995 = vmatmul.mubr.f32.gmra.mrb[0].mxu0 %v385
        %v996 = vpop.f32.mrb[0].mxu0
        %v997 = vadd.f32 %v918, %v996
        %v998 = vpop.f32.mrb[0].mxu0
        %999 = vmatprep.mubr.f32.mxu0 %v410
        %1000 = vmatmul.mubr.f32.gmra.mrb[0].mxu0 %v409
        %v1001 = vpop.f32.mrb[0].mxu0
        %v1002 = vadd.f32 %v918, %v1001
        %v1003 = vpop.f32.mrb[0].mxu0
        %1004 = vmatprep.mubr.f32.mxu0 %v434
        %1005 = vmatmul.mubr.f32.gmra.mrb[0].mxu0 %v433
        %v1006 = vpop.f32.mrb[0].mxu0
        %v1007 = vadd.f32 %v918, %v1006
        %v1008 = vpop.f32.mrb[0].mxu0
        %1009 = vmatprep.mubr.f32.mxu0 %v458
        %1010 = vmatmul.mubr.f32.gmra.mrb[0].mxu0 %v457
        %v1011 = vpop.f32.mrb[0].mxu0
        %v1012 = vadd.f32 %v918, %v1011
        %v1013 = vpop.f32.mrb[0].mxu0
        %1014 = vmatprep.mubr.f32.mxu0 %v482
        %1015 = vmatmul.mubr.f32.gmra.mrb[0].mxu0 %v481
        %v1016 = vpop.f32.mrb[0].mxu0
        %v1017 = vadd.f32 %v918, %v1016
        %v1018 = vpop.f32.mrb[0].mxu0
        %1019 = vmatprep.mubr.f32.mxu0 %v506
        %1020 = vmatmul.mubr.f32.gmra.mrb[0].mxu0 %v505
        %v1021 = vpop.f32.mrb[0].mxu0
        %v1022 = vadd.f32 %v918, %v1021
        %v1023 = vpop.f32.mrb[0].mxu0
        %1024 = vdwg.mxu0
        %1025 = vmatprep.subr.mxu0 0.0
        %1026 = vmatpush1.msra.mxu0 %v561
        %1027 = vmatprep.subr.mxu0 0.0
        %1028 = vmatpush1.msra.mxu0 %v562
        %1029 = vmatprep.subr.mxu0 0.0
        %1030 = vmatpush1.msra.mxu0 %v563
        %1031 = vmatprep.subr.mxu0 0.0
        %1032 = vmatpush1.msra.mxu0 %v564
        %1033 = vmatprep.subr.mxu0 0.0
        %1034 = vmatpush1.msra.mxu0 %v565
        %1035 = vmatprep.subr.mxu0 0.0
        %1036 = vmatpush1.msra.mxu0 %v566
        %1037 = vmatprep.subr.mxu0 0.0
        %1038 = vmatpush1.msra.mxu0 %v567
        %1039 = vmatprep.subr.mxu0 0.0
        %1040 = vmatpush1.msra.mxu0 %v568
        %1041 = vmatprep.subr.mxu0 0.0
        %1042 = vmatpush1.msra.mxu0 %v569
        %1043 = vmatprep.subr.mxu0 0.0
        %1044 = vmatpush1.msra.mxu0 %v570
        %1045 = vmatprep.subr.mxu0 0.0
        %1046 = vmatpush1.msra.mxu0 %v571
        %1047 = vmatprep.subr.mxu0 0.0
        %1048 = vmatpush1.msra.mxu0 %v572
        %1049 = vmatprep.subr.mxu0 0.0
        %1050 = vmatpush1.msra.mxu0 %v573
        %1051 = vmatprep.subr.mxu0 0.0
        %1052 = vmatpush1.msra.mxu0 %v574
        %1053 = vmatprep.subr.mxu0 0.0
        %1054 = vmatpush1.msra.mxu0 %v575
        %1055 = vmatprep.subr.mxu0 0.0
        %1056 = vmatpush1.msra.mxu0 %v576
        %1057 = vmatprep.subr.mxu0 0.0
        %1058 = vmatpush1.msra.mxu0 %v577
        %1059 = vmatprep.subr.mxu0 0.0
        %1060 = vmatpush1.msra.mxu0 %v578
        %1061 = vmatprep.subr.mxu0 0.0
        %1062 = vmatpush1.msra.mxu0 %v579
        %1063 = vmatprep.subr.mxu0 0.0
        %1064 = vmatpush1.msra.mxu0 %v580
        %1065 = vmatprep.subr.mxu0 0.0
        %1066 = vmatpush1.msra.mxu0 %v581
        %1067 = vmatprep.subr.mxu0 0.0
        %1068 = vmatpush1.msra.mxu0 %v582
        %1069 = vmatprep.subr.mxu0 0.0
        %1070 = vmatpush1.msra.mxu0 %v583
        %1071 = vmatprep.subr.mxu0 0.0
        %1072 = vmatpush1.msra.mxu0 %v584
        %1073 = vmatprep.subr.mxu0 0.0
        %1074 = vmatpush1.msra.mxu0 %v585
        %1075 = vmatprep.subr.mxu0 0.0
        %1076 = vmatpush1.msra.mxu0 %v586
        %1077 = vmatprep.subr.mxu0 0.0
        %1078 = vmatpush1.msra.mxu0 %v587
        %1079 = vmatprep.subr.mxu0 0.0
        %1080 = vmatpush1.msra.mxu0 %v588
        %1081 = vmatprep.subr.mxu0 0.0
        %1082 = vmatpush1.msra.mxu0 %v589
        %1083 = vmatprep.subr.mxu0 0.0
        %1084 = vmatpush1.msra.mxu0 %v590
        %1085 = vmatprep.subr.mxu0 0.0
        %1086 = vmatpush1.msra.mxu0 %v591
        %1087 = vmatprep.subr.mxu0 0.0
        %1088 = vmatpush1.msra.mxu0 %v592
        %1089 = vmatprep.mubr.f32.mxu0 %v340
        %1090 = vmatmul.mubr.f32.gmra.mrb[0].mxu0 %v339
        %v1091 = vpop.f32.mrb[0].mxu0
        %v1092 = vadd.f32 %v987, %v1091
        %v1093 = vpop.f32.mrb[0].mxu0
        %1094 = vmatprep.mubr.f32.mxu0 %v364
        %1095 = vmatmul.mubr.f32.gmra.mrb[0].mxu0 %v363
        %v1096 = vpop.f32.mrb[0].mxu0
        %v1097 = vadd.f32 %v992, %v1096
        %v1098 = vpop.f32.mrb[0].mxu0
        %1099 = vmatprep.mubr.f32.mxu0 %v388
        %1100 = vmatmul.mubr.f32.gmra.mrb[0].mxu0 %v387
        %v1101 = vpop.f32.mrb[0].mxu0
        %v1102 = vadd.f32 %v997, %v1101
        %v1103 = vpop.f32.mrb[0].mxu0
        %1104 = vmatprep.mubr.f32.mxu0 %v412
        %1105 = vmatmul.mubr.f32.gmra.mrb[0].mxu0 %v411
        %v1106 = vpop.f32.mrb[0].mxu0
        %v1107 = vadd.f32 %v1002, %v1106
        %v1108 = vpop.f32.mrb[0].mxu0
        %1109 = vmatprep.mubr.f32.mxu0 %v436
        %1110 = vmatmul.mubr.f32.gmra.mrb[0].mxu0 %v435
        %v1111 = vpop.f32.mrb[0].mxu0
        %v1112 = vadd.f32 %v1007, %v1111
        %v1113 = vpop.f32.mrb[0].mxu0
        %1114 = vmatprep.mubr.f32.mxu0 %v460
        %1115 = vmatmul.mubr.f32.gmra.mrb[0].mxu0 %v459
        %v1116 = vpop.f32.mrb[0].mxu0
        %v1117 = vadd.f32 %v1012, %v1116
        %v1118 = vpop.f32.mrb[0].mxu0
        %1119 = vmatprep.mubr.f32.mxu0 %v484
        %1120 = vmatmul.mubr.f32.gmra.mrb[0].mxu0 %v483
        %v1121 = vpop.f32.mrb[0].mxu0
        %v1122 = vadd.f32 %v1017, %v1121
        %v1123 = vpop.f32.mrb[0].mxu0
        %1124 = vmatprep.mubr.f32.mxu0 %v508
        %1125 = vmatmul.mubr.f32.gmra.mrb[0].mxu0 %v507
        %v1126 = vpop.f32.mrb[0].mxu0
        %v1127 = vadd.f32 %v1022, %v1126
        %v1128 = vpop.f32.mrb[0].mxu0
        %1129 = vdwg.mxu0
        %1130 = vmatprep.subr.mxu0 0.0
        %1131 = vmatpush1.msra.mxu0 %v593
        %1132 = vmatprep.subr.mxu0 0.0
        %1133 = vmatpush1.msra.mxu0 %v594
        %1134 = vmatprep.subr.mxu0 0.0
        %1135 = vmatpush1.msra.mxu0 %v595
        %1136 = vmatprep.subr.mxu0 0.0
        %1137 = vmatpush1.msra.mxu0 %v596
        %1138 = vmatprep.subr.mxu0 0.0
        %1139 = vmatpush1.msra.mxu0 %v597
        %1140 = vmatprep.subr.mxu0 0.0
        %1141 = vmatpush1.msra.mxu0 %v598
        %1142 = vmatprep.subr.mxu0 0.0
        %1143 = vmatpush1.msra.mxu0 %v599
        %1144 = vmatprep.subr.mxu0 0.0
        %1145 = vmatpush1.msra.mxu0 %v600
        %1146 = vmatprep.subr.mxu0 0.0
        %1147 = vmatpush1.msra.mxu0 %v601
        %1148 = vmatprep.subr.mxu0 0.0
        %1149 = vmatpush1.msra.mxu0 %v602
        %1150 = vmatprep.subr.mxu0 0.0
        %1151 = vmatpush1.msra.mxu0 %v603
        %1152 = vmatprep.subr.mxu0 0.0
        %1153 = vmatpush1.msra.mxu0 %v604
        %1154 = vmatprep.subr.mxu0 0.0
        %1155 = vmatpush1.msra.mxu0 %v605
        %1156 = vmatprep.subr.mxu0 0.0
        %1157 = vmatpush1.msra.mxu0 %v606
        %1158 = vmatprep.subr.mxu0 0.0
        %1159 = vmatpush1.msra.mxu0 %v607
        %1160 = vmatprep.subr.mxu0 0.0
        %1161 = vmatpush1.msra.mxu0 %v608
        %1162 = vmatprep.subr.mxu0 0.0
        %1163 = vmatpush1.msra.mxu0 %v609
        %1164 = vmatprep.subr.mxu0 0.0
        %1165 = vmatpush1.msra.mxu0 %v610
        %1166 = vmatprep.subr.mxu0 0.0
        %1167 = vmatpush1.msra.mxu0 %v611
        %1168 = vmatprep.subr.mxu0 0.0
        %1169 = vmatpush1.msra.mxu0 %v612
        %1170 = vmatprep.subr.mxu0 0.0
        %1171 = vmatpush1.msra.mxu0 %v613
        %1172 = vmatprep.subr.mxu0 0.0
        %1173 = vmatpush1.msra.mxu0 %v614
        %1174 = vmatprep.subr.mxu0 0.0
        %1175 = vmatpush1.msra.mxu0 %v615
        %1176 = vmatprep.subr.mxu0 0.0
        %1177 = vmatpush1.msra.mxu0 %v616
        %1178 = vmatprep.subr.mxu0 0.0
        %1179 = vmatpush1.msra.mxu0 %v617
        %1180 = vmatprep.subr.mxu0 0.0
        %1181 = vmatpush1.msra.mxu0 %v618
        %1182 = vmatprep.subr.mxu0 0.0
        %1183 = vmatpush1.msra.mxu0 %v619
        %1184 = vmatprep.subr.mxu0 0.0
        %1185 = vmatpush1.msra.mxu0 %v620
        %1186 = vmatprep.subr.mxu0 0.0
        %1187 = vmatpush1.msra.mxu0 %v621
        %1188 = vmatprep.subr.mxu0 0.0
        %1189 = vmatpush1.msra.mxu0 %v622
        %1190 = vmatprep.subr.mxu0 0.0
        %1191 = vmatpush1.msra.mxu0 %v623
        %1192 = vmatprep.subr.mxu0 0.0
        %1193 = vmatpush1.msra.mxu0 %v624
        %1194 = vmatprep.mubr.f32.mxu0 %v342
        %1195 = vmatmul.mubr.f32.gmra.mrb[0].mxu0 %v341
        %v1196 = vpop.f32.mrb[0].mxu0
        %v1197 = vadd.f32 %v1092, %v1196
        %v1198 = vpop.f32.mrb[0].mxu0
        %1199 = vmatprep.mubr.f32.mxu0 %v366
        %1200 = vmatmul.mubr.f32.gmra.mrb[0].mxu0 %v365
        %v1201 = vpop.f32.mrb[0].mxu0
        %v1202 = vadd.f32 %v1097, %v1201
        %v1203 = vpop.f32.mrb[0].mxu0
        %1204 = vmatprep.mubr.f32.mxu0 %v390
        %1205 = vmatmul.mubr.f32.gmra.mrb[0].mxu0 %v389
        %v1206 = vpop.f32.mrb[0].mxu0
        %v1207 = vadd.f32 %v1102, %v1206
        %v1208 = vpop.f32.mrb[0].mxu0
        %1209 = vmatprep.mubr.f32.mxu0 %v414
        %1210 = vmatmul.mubr.f32.gmra.mrb[0].mxu0 %v413
        %v1211 = vpop.f32.mrb[0].mxu0
        %v1212 = vadd.f32 %v1107, %v1211
        %v1213 = vpop.f32.mrb[0].mxu0
        %1214 = vmatprep.mubr.f32.mxu0 %v438
        %1215 = vmatmul.mubr.f32.gmra.mrb[0].mxu0 %v437
        %v1216 = vpop.f32.mrb[0].mxu0
        %v1217 = vadd.f32 %v1112, %v1216
        %v1218 = vpop.f32.mrb[0].mxu0
        %1219 = vmatprep.mubr.f32.mxu0 %v462
        %1220 = vmatmul.mubr.f32.gmra.mrb[0].mxu0 %v461
        %v1221 = vpop.f32.mrb[0].mxu0
        %v1222 = vadd.f32 %v1117, %v1221
        %v1223 = vpop.f32.mrb[0].mxu0
        %1224 = vmatprep.mubr.f32.mxu0 %v486
        %1225 = vmatmul.mubr.f32.gmra.mrb[0].mxu0 %v485
        %v1226 = vpop.f32.mrb[0].mxu0
        %v1227 = vadd.f32 %v1122, %v1226
        %v1228 = vpop.f32.mrb[0].mxu0
        %1229 = vmatprep.mubr.f32.mxu0 %v510
        %1230 = vmatmul.mubr.f32.gmra.mrb[0].mxu0 %v509
        %v1231 = vpop.f32.mrb[0].mxu0
        %v1232 = vadd.f32 %v1127, %v1231
        %v1233 = vpop.f32.mrb[0].mxu0
        %1234 = vdwg.mxu0
        %1235 = vmatprep.subr.mxu0 0.0
        %1236 = vmatpush1.msra.mxu0 %v625
        %1237 = vmatprep.subr.mxu0 0.0
        %1238 = vmatpush1.msra.mxu0 %v626
        %1239 = vmatprep.subr.mxu0 0.0
        %1240 = vmatpush1.msra.mxu0 %v627
        %1241 = vmatprep.subr.mxu0 0.0
        %1242 = vmatpush1.msra.mxu0 %v628
        %1243 = vmatprep.subr.mxu0 0.0
        %1244 = vmatpush1.msra.mxu0 %v629
        %1245 = vmatprep.subr.mxu0 0.0
        %1246 = vmatpush1.msra.mxu0 %v630
        %1247 = vmatprep.subr.mxu0 0.0
        %1248 = vmatpush1.msra.mxu0 %v631
        %1249 = vmatprep.subr.mxu0 0.0
        %1250 = vmatpush1.msra.mxu0 %v632
        %1251 = vmatprep.subr.mxu0 0.0
        %1252 = vmatpush1.msra.mxu0 %v633
        %1253 = vmatprep.subr.mxu0 0.0
        %1254 = vmatpush1.msra.mxu0 %v634
        %1255 = vmatprep.subr.mxu0 0.0
        %1256 = vmatpush1.msra.mxu0 %v635
        %1257 = vmatprep.subr.mxu0 0.0
        %1258 = vmatpush1.msra.mxu0 %v636
        %1259 = vmatprep.subr.mxu0 0.0
        %1260 = vmatpush1.msra.mxu0 %v637
        %1261 = vmatprep.subr.mxu0 0.0
        %1262 = vmatpush1.msra.mxu0 %v638
        %1263 = vmatprep.subr.mxu0 0.0
        %1264 = vmatpush1.msra.mxu0 %v639
        %1265 = vmatprep.subr.mxu0 0.0
        %1266 = vmatpush1.msra.mxu0 %v640
        %1267 = vmatprep.subr.mxu0 0.0
        %1268 = vmatpush1.msra.mxu0 %v641
        %1269 = vmatprep.subr.mxu0 0.0
        %1270 = vmatpush1.msra.mxu0 %v642
        %1271 = vmatprep.subr.mxu0 0.0
        %1272 = vmatpush1.msra.mxu0 %v643
        %1273 = vmatprep.subr.mxu0 0.0
        %1274 = vmatpush1.msra.mxu0 %v644
        %1275 = vmatprep.subr.mxu0 0.0
        %1276 = vmatpush1.msra.mxu0 %v645
        %1277 = vmatprep.subr.mxu0 0.0
        %1278 = vmatpush1.msra.mxu0 %v646
        %1279 = vmatprep.subr.mxu0 0.0
        %1280 = vmatpush1.msra.mxu0 %v647
        %1281 = vmatprep.subr.mxu0 0.0
        %1282 = vmatpush1.msra.mxu0 %v648
        %1283 = vmatprep.subr.mxu0 0.0
        %1284 = vmatpush1.msra.mxu0 %v649
        %1285 = vmatprep.subr.mxu0 0.0
        %1286 = vmatpush1.msra.mxu0 %v650
        %1287 = vmatprep.subr.mxu0 0.0
        %1288 = vmatpush1.msra.mxu0 %v651
        %1289 = vmatprep.subr.mxu0 0.0
        %1290 = vmatpush1.msra.mxu0 %v652
        %1291 = vmatprep.subr.mxu0 0.0
        %1292 = vmatpush1.msra.mxu0 %v653
        %1293 = vmatprep.subr.mxu0 0.0
        %1294 = vmatpush1.msra.mxu0 %v654
        %1295 = vmatprep.subr.mxu0 0.0
        %1296 = vmatpush1.msra.mxu0 %v655
        %1297 = vmatprep.subr.mxu0 0.0
        %1298 = vmatpush1.msra.mxu0 %v656
        %1299 = vmatprep.mubr.f32.mxu0 %v344
        %1300 = vmatmul.mubr.f32.gmra.mrb[0].mxu0 %v343
        %v1301 = vpop.f32.mrb[0].mxu0
        %v1302 = vadd.f32 %v1197, %v1301
        %v1303 = vpop.f32.mrb[0].mxu0
        %1304 = vmatprep.mubr.f32.mxu0 %v368
        %1305 = vmatmul.mubr.f32.gmra.mrb[0].mxu0 %v367
        %v1306 = vpop.f32.mrb[0].mxu0
        %v1307 = vadd.f32 %v1202, %v1306
        %v1308 = vpop.f32.mrb[0].mxu0
        %1309 = vmatprep.mubr.f32.mxu0 %v392
        %1310 = vmatmul.mubr.f32.gmra.mrb[0].mxu0 %v391
        %v1311 = vpop.f32.mrb[0].mxu0
        %v1312 = vadd.f32 %v1207, %v1311
        %v1313 = vpop.f32.mrb[0].mxu0
        %1314 = vmatprep.mubr.f32.mxu0 %v416
        %1315 = vmatmul.mubr.f32.gmra.mrb[0].mxu0 %v415
        %v1316 = vpop.f32.mrb[0].mxu0
        %v1317 = vadd.f32 %v1212, %v1316
        %v1318 = vpop.f32.mrb[0].mxu0
        %1319 = vmatprep.mubr.f32.mxu0 %v440
        %1320 = vmatmul.mubr.f32.gmra.mrb[0].mxu0 %v439
        %v1321 = vpop.f32.mrb[0].mxu0
        %v1322 = vadd.f32 %v1217, %v1321
        %v1323 = vpop.f32.mrb[0].mxu0
        %1324 = vmatprep.mubr.f32.mxu0 %v464
        %1325 = vmatmul.mubr.f32.gmra.mrb[0].mxu0 %v463
        %v1326 = vpop.f32.mrb[0].mxu0
        %v1327 = vadd.f32 %v1222, %v1326
        %v1328 = vpop.f32.mrb[0].mxu0
        %1329 = vmatprep.mubr.f32.mxu0 %v488
        %1330 = vmatmul.mubr.f32.gmra.mrb[0].mxu0 %v487
        %v1331 = vpop.f32.mrb[0].mxu0
        %v1332 = vadd.f32 %v1227, %v1331
        %v1333 = vpop.f32.mrb[0].mxu0
        %1334 = vmatprep.mubr.f32.mxu0 %v512
        %1335 = vmatmul.mubr.f32.gmra.mrb[0].mxu0 %v511
        %v1336 = vpop.f32.mrb[0].mxu0
        %v1337 = vadd.f32 %v1232, %v1336
        %v1338 = vpop.f32.mrb[0].mxu0
        %1339 = vdwg.mxu0
        %1340 = vmatprep.subr.mxu0 0.0
        %1341 = vmatpush1.msra.mxu0 %v657
        %1342 = vmatprep.subr.mxu0 0.0
        %1343 = vmatpush1.msra.mxu0 %v658
        %1344 = vmatprep.subr.mxu0 0.0
        %1345 = vmatpush1.msra.mxu0 %v659
        %1346 = vmatprep.subr.mxu0 0.0
        %1347 = vmatpush1.msra.mxu0 %v660
        %1348 = vmatprep.subr.mxu0 0.0
        %1349 = vmatpush1.msra.mxu0 %v661
        %1350 = vmatprep.subr.mxu0 0.0
        %1351 = vmatpush1.msra.mxu0 %v662
        %1352 = vmatprep.subr.mxu0 0.0
        %1353 = vmatpush1.msra.mxu0 %v663
        %1354 = vmatprep.subr.mxu0 0.0
        %1355 = vmatpush1.msra.mxu0 %v664
        %1356 = vmatprep.subr.mxu0 0.0
        %1357 = vmatpush1.msra.mxu0 %v665
        %1358 = vmatprep.subr.mxu0 0.0
        %1359 = vmatpush1.msra.mxu0 %v666
        %1360 = vmatprep.subr.mxu0 0.0
        %1361 = vmatpush1.msra.mxu0 %v667
        %1362 = vmatprep.subr.mxu0 0.0
        %1363 = vmatpush1.msra.mxu0 %v668
        %1364 = vmatprep.subr.mxu0 0.0
        %1365 = vmatpush1.msra.mxu0 %v669
        %1366 = vmatprep.subr.mxu0 0.0
        %1367 = vmatpush1.msra.mxu0 %v670
        %1368 = vmatprep.subr.mxu0 0.0
        %1369 = vmatpush1.msra.mxu0 %v671
        %1370 = vmatprep.subr.mxu0 0.0
        %1371 = vmatpush1.msra.mxu0 %v672
        %1372 = vmatprep.subr.mxu0 0.0
        %1373 = vmatpush1.msra.mxu0 %v673
        %1374 = vmatprep.subr.mxu0 0.0
        %1375 = vmatpush1.msra.mxu0 %v674
        %1376 = vmatprep.subr.mxu0 0.0
        %1377 = vmatpush1.msra.mxu0 %v675
        %1378 = vmatprep.subr.mxu0 0.0
        %1379 = vmatpush1.msra.mxu0 %v676
        %1380 = vmatprep.subr.mxu0 0.0
        %1381 = vmatpush1.msra.mxu0 %v677
        %1382 = vmatprep.subr.mxu0 0.0
        %1383 = vmatpush1.msra.mxu0 %v678
        %1384 = vmatprep.subr.mxu0 0.0
        %1385 = vmatpush1.msra.mxu0 %v679
        %1386 = vmatprep.subr.mxu0 0.0
        %1387 = vmatpush1.msra.mxu0 %v680
        %1388 = vmatprep.subr.mxu0 0.0
        %1389 = vmatpush1.msra.mxu0 %v681
        %1390 = vmatprep.subr.mxu0 0.0
        %1391 = vmatpush1.msra.mxu0 %v682
        %1392 = vmatprep.subr.mxu0 0.0
        %1393 = vmatpush1.msra.mxu0 %v683
        %1394 = vmatprep.subr.mxu0 0.0
        %1395 = vmatpush1.msra.mxu0 %v684
        %1396 = vmatprep.subr.mxu0 0.0
        %1397 = vmatpush1.msra.mxu0 %v685
        %1398 = vmatprep.subr.mxu0 0.0
        %1399 = vmatpush1.msra.mxu0 %v686
        %1400 = vmatprep.subr.mxu0 0.0
        %1401 = vmatpush1.msra.mxu0 %v687
        %1402 = vmatprep.subr.mxu0 0.0
        %1403 = vmatpush1.msra.mxu0 %v688
        %1404 = vmatprep.mubr.f32.mxu0 %v346
        %1405 = vmatmul.mubr.f32.gmra.mrb[0].mxu0 %v345
        %v1406 = vpop.f32.mrb[0].mxu0
        %v1407 = vadd.f32 %v1302, %v1406
        %v1408 = vpop.f32.mrb[0].mxu0
        %1409 = vmatprep.mubr.f32.mxu0 %v370
        %1410 = vmatmul.mubr.f32.gmra.mrb[0].mxu0 %v369
        %v1411 = vpop.f32.mrb[0].mxu0
        %v1412 = vadd.f32 %v1307, %v1411
        %v1413 = vpop.f32.mrb[0].mxu0
        %1414 = vmatprep.mubr.f32.mxu0 %v394
        %1415 = vmatmul.mubr.f32.gmra.mrb[0].mxu0 %v393
        %v1416 = vpop.f32.mrb[0].mxu0
        %v1417 = vadd.f32 %v1312, %v1416
        %v1418 = vpop.f32.mrb[0].mxu0
        %1419 = vmatprep.mubr.f32.mxu0 %v418
        %1420 = vmatmul.mubr.f32.gmra.mrb[0].mxu0 %v417
        %v1421 = vpop.f32.mrb[0].mxu0
        %v1422 = vadd.f32 %v1317, %v1421
        %v1423 = vpop.f32.mrb[0].mxu0
        %1424 = vmatprep.mubr.f32.mxu0 %v442
        %1425 = vmatmul.mubr.f32.gmra.mrb[0].mxu0 %v441
        %v1426 = vpop.f32.mrb[0].mxu0
        %v1427 = vadd.f32 %v1322, %v1426
        %v1428 = vpop.f32.mrb[0].mxu0
        %1429 = vmatprep.mubr.f32.mxu0 %v466
        %1430 = vmatmul.mubr.f32.gmra.mrb[0].mxu0 %v465
        %v1431 = vpop.f32.mrb[0].mxu0
        %v1432 = vadd.f32 %v1327, %v1431
        %v1433 = vpop.f32.mrb[0].mxu0
        %1434 = vmatprep.mubr.f32.mxu0 %v490
        %1435 = vmatmul.mubr.f32.gmra.mrb[0].mxu0 %v489
        %v1436 = vpop.f32.mrb[0].mxu0
        %v1437 = vadd.f32 %v1332, %v1436
        %v1438 = vpop.f32.mrb[0].mxu0
        %1439 = vmatprep.mubr.f32.mxu0 %v514
        %1440 = vmatmul.mubr.f32.gmra.mrb[0].mxu0 %v513
        %v1441 = vpop.f32.mrb[0].mxu0
        %v1442 = vadd.f32 %v1337, %v1441
        %v1443 = vpop.f32.mrb[0].mxu0
        %1444 = vdwg.mxu0
        %1445 = vmatprep.subr.mxu0 0.0
        %1446 = vmatpush1.msra.mxu0 %v689
        %1447 = vmatprep.subr.mxu0 0.0
        %1448 = vmatpush1.msra.mxu0 %v690
        %1449 = vmatprep.subr.mxu0 0.0
        %1450 = vmatpush1.msra.mxu0 %v691
        %1451 = vmatprep.subr.mxu0 0.0
        %1452 = vmatpush1.msra.mxu0 %v692
        %1453 = vmatprep.subr.mxu0 0.0
        %1454 = vmatpush1.msra.mxu0 %v693
        %1455 = vmatprep.subr.mxu0 0.0
        %1456 = vmatpush1.msra.mxu0 %v694
        %1457 = vmatprep.subr.mxu0 0.0
        %1458 = vmatpush1.msra.mxu0 %v695
        %1459 = vmatprep.subr.mxu0 0.0
        %1460 = vmatpush1.msra.mxu0 %v696
        %1461 = vmatprep.subr.mxu0 0.0
        %1462 = vmatpush1.msra.mxu0 %v697
        %1463 = vmatprep.subr.mxu0 0.0
        %1464 = vmatpush1.msra.mxu0 %v698
        %1465 = vmatprep.subr.mxu0 0.0
        %1466 = vmatpush1.msra.mxu0 %v699
        %1467 = vmatprep.subr.mxu0 0.0
        %1468 = vmatpush1.msra.mxu0 %v700
        %1469 = vmatprep.subr.mxu0 0.0
        %1470 = vmatpush1.msra.mxu0 %v701
        %1471 = vmatprep.subr.mxu0 0.0
        %1472 = vmatpush1.msra.mxu0 %v702
        %1473 = vmatprep.subr.mxu0 0.0
        %1474 = vmatpush1.msra.mxu0 %v703
        %1475 = vmatprep.subr.mxu0 0.0
        %1476 = vmatpush1.msra.mxu0 %v704
        %1477 = vmatprep.subr.mxu0 0.0
        %1478 = vmatpush1.msra.mxu0 %v705
        %1479 = vmatprep.subr.mxu0 0.0
        %1480 = vmatpush1.msra.mxu0 %v706
        %1481 = vmatprep.subr.mxu0 0.0
        %1482 = vmatpush1.msra.mxu0 %v707
        %1483 = vmatprep.subr.mxu0 0.0
        %1484 = vmatpush1.msra.mxu0 %v708
        %1485 = vmatprep.subr.mxu0 0.0
        %1486 = vmatpush1.msra.mxu0 %v709
        %1487 = vmatprep.subr.mxu0 0.0
        %1488 = vmatpush1.msra.mxu0 %v710
        %1489 = vmatprep.subr.mxu0 0.0
        %1490 = vmatpush1.msra.mxu0 %v711
        %1491 = vmatprep.subr.mxu0 0.0
        %1492 = vmatpush1.msra.mxu0 %v712
        %1493 = vmatprep.subr.mxu0 0.0
        %1494 = vmatpush1.msra.mxu0 %v713
        %1495 = vmatprep.subr.mxu0 0.0
        %1496 = vmatpush1.msra.mxu0 %v714
        %1497 = vmatprep.subr.mxu0 0.0
        %1498 = vmatpush1.msra.mxu0 %v715
        %1499 = vmatprep.subr.mxu0 0.0
        %1500 = vmatpush1.msra.mxu0 %v716
        %1501 = vmatprep.subr.mxu0 0.0
        %1502 = vmatpush1.msra.mxu0 %v717
        %1503 = vmatprep.subr.mxu0 0.0
        %1504 = vmatpush1.msra.mxu0 %v718
        %1505 = vmatprep.subr.mxu0 0.0
        %1506 = vmatpush1.msra.mxu0 %v719
        %1507 = vmatprep.subr.mxu0 0.0
        %1508 = vmatpush1.msra.mxu0 %v720
        %1509 = vmatprep.mubr.f32.mxu0 %v348
        %1510 = vmatmul.mubr.f32.gmra.mrb[0].mxu0 %v347
        %v1511 = vpop.f32.mrb[0].mxu0
        %v1512 = vadd.f32 %v1407, %v1511
        %v1513 = vpop.f32.mrb[0].mxu0
        %1514 = vmatprep.mubr.f32.mxu0 %v372
        %1515 = vmatmul.mubr.f32.gmra.mrb[0].mxu0 %v371
        %v1516 = vpop.f32.mrb[0].mxu0
        %v1517 = vadd.f32 %v1412, %v1516
        %v1518 = vpop.f32.mrb[0].mxu0
        %1519 = vmatprep.mubr.f32.mxu0 %v396
        %1520 = vmatmul.mubr.f32.gmra.mrb[0].mxu0 %v395
        %v1521 = vpop.f32.mrb[0].mxu0
        %v1522 = vadd.f32 %v1417, %v1521
        %v1523 = vpop.f32.mrb[0].mxu0
        %1524 = vmatprep.mubr.f32.mxu0 %v420
        %1525 = vmatmul.mubr.f32.gmra.mrb[0].mxu0 %v419
        %v1526 = vpop.f32.mrb[0].mxu0
        %v1527 = vadd.f32 %v1422, %v1526
        %v1528 = vpop.f32.mrb[0].mxu0
        %1529 = vmatprep.mubr.f32.mxu0 %v444
        %1530 = vmatmul.mubr.f32.gmra.mrb[0].mxu0 %v443
        %v1531 = vpop.f32.mrb[0].mxu0
        %v1532 = vadd.f32 %v1427, %v1531
        %v1533 = vpop.f32.mrb[0].mxu0
        %1534 = vmatprep.mubr.f32.mxu0 %v468
        %1535 = vmatmul.mubr.f32.gmra.mrb[0].mxu0 %v467
        %v1536 = vpop.f32.mrb[0].mxu0
        %v1537 = vadd.f32 %v1432, %v1536
        %v1538 = vpop.f32.mrb[0].mxu0
        %1539 = vmatprep.mubr.f32.mxu0 %v492
        %1540 = vmatmul.mubr.f32.gmra.mrb[0].mxu0 %v491
        %v1541 = vpop.f32.mrb[0].mxu0
        %v1542 = vadd.f32 %v1437, %v1541
        %v1543 = vpop.f32.mrb[0].mxu0
        %1544 = vmatprep.mubr.f32.mxu0 %v516
        %1545 = vmatmul.mubr.f32.gmra.mrb[0].mxu0 %v515
        %v1546 = vpop.f32.mrb[0].mxu0
        %v1547 = vadd.f32 %v1442, %v1546
        %v1548 = vpop.f32.mrb[0].mxu0
        %1549 = vdwg.mxu0
        %1550 = vmatprep.subr.mxu0 0.0
        %1551 = vmatpush1.msra.mxu0 %v721
        %1552 = vmatprep.subr.mxu0 0.0
        %1553 = vmatpush1.msra.mxu0 %v722
        %1554 = vmatprep.subr.mxu0 0.0
        %1555 = vmatpush1.msra.mxu0 %v723
        %1556 = vmatprep.subr.mxu0 0.0
        %1557 = vmatpush1.msra.mxu0 %v724
        %1558 = vmatprep.subr.mxu0 0.0
        %1559 = vmatpush1.msra.mxu0 %v725
        %1560 = vmatprep.subr.mxu0 0.0
        %1561 = vmatpush1.msra.mxu0 %v726
        %1562 = vmatprep.subr.mxu0 0.0
        %1563 = vmatpush1.msra.mxu0 %v727
        %1564 = vmatprep.subr.mxu0 0.0
        %1565 = vmatpush1.msra.mxu0 %v728
        %1566 = vmatprep.subr.mxu0 0.0
        %1567 = vmatpush1.msra.mxu0 %v729
        %1568 = vmatprep.subr.mxu0 0.0
        %1569 = vmatpush1.msra.mxu0 %v730
        %1570 = vmatprep.subr.mxu0 0.0
        %1571 = vmatpush1.msra.mxu0 %v731
        %1572 = vmatprep.subr.mxu0 0.0
        %1573 = vmatpush1.msra.mxu0 %v732
        %1574 = vmatprep.subr.mxu0 0.0
        %1575 = vmatpush1.msra.mxu0 %v733
        %1576 = vmatprep.subr.mxu0 0.0
        %1577 = vmatpush1.msra.mxu0 %v734
        %1578 = vmatprep.subr.mxu0 0.0
        %1579 = vmatpush1.msra.mxu0 %v735
        %1580 = vmatprep.subr.mxu0 0.0
        %1581 = vmatpush1.msra.mxu0 %v736
        %1582 = vmatprep.subr.mxu0 0.0
        %1583 = vmatpush1.msra.mxu0 %v737
        %1584 = vmatprep.subr.mxu0 0.0
        %1585 = vmatpush1.msra.mxu0 %v738
        %1586 = vmatprep.subr.mxu0 0.0
        %1587 = vmatpush1.msra.mxu0 %v739
        %1588 = vmatprep.subr.mxu0 0.0
        %1589 = vmatpush1.msra.mxu0 %v740
        %1590 = vmatprep.subr.mxu0 0.0
        %1591 = vmatpush1.msra.mxu0 %v741
        %1592 = vmatprep.subr.mxu0 0.0
        %1593 = vmatpush1.msra.mxu0 %v742
        %1594 = vmatprep.subr.mxu0 0.0
        %1595 = vmatpush1.msra.mxu0 %v743
        %1596 = vmatprep.subr.mxu0 0.0
        %1597 = vmatpush1.msra.mxu0 %v744
        %1598 = vmatprep.subr.mxu0 0.0
        %1599 = vmatpush1.msra.mxu0 %v745
        %1600 = vmatprep.subr.mxu0 0.0
        %1601 = vmatpush1.msra.mxu0 %v746
        %1602 = vmatprep.subr.mxu0 0.0
        %1603 = vmatpush1.msra.mxu0 %v747
        %1604 = vmatprep.subr.mxu0 0.0
        %1605 = vmatpush1.msra.mxu0 %v748
        %1606 = vmatprep.subr.mxu0 0.0
        %1607 = vmatpush1.msra.mxu0 %v749
        %1608 = vmatprep.subr.mxu0 0.0
        %1609 = vmatpush1.msra.mxu0 %v750
        %1610 = vmatprep.subr.mxu0 0.0
        %1611 = vmatpush1.msra.mxu0 %v751
        %1612 = vmatprep.subr.mxu0 0.0
        %1613 = vmatpush1.msra.mxu0 %v752
        %1614 = vmatprep.mubr.f32.mxu0 %v350
        %1615 = vmatmul.mubr.f32.gmra.mrb[0].mxu0 %v349
        %v1616 = vpop.f32.mrb[0].mxu0
        %v1617 = vadd.f32 %v1512, %v1616
        %v1618 = vpop.f32.mrb[0].mxu0
        %1619 = vmatprep.mubr.f32.mxu0 %v374
        %1620 = vmatmul.mubr.f32.gmra.mrb[0].mxu0 %v373
        %v1621 = vpop.f32.mrb[0].mxu0
        %v1622 = vadd.f32 %v1517, %v1621
        %v1623 = vpop.f32.mrb[0].mxu0
        %1624 = vmatprep.mubr.f32.mxu0 %v398
        %1625 = vmatmul.mubr.f32.gmra.mrb[0].mxu0 %v397
        %v1626 = vpop.f32.mrb[0].mxu0
        %v1627 = vadd.f32 %v1522, %v1626
        %v1628 = vpop.f32.mrb[0].mxu0
        %1629 = vmatprep.mubr.f32.mxu0 %v422
        %1630 = vmatmul.mubr.f32.gmra.mrb[0].mxu0 %v421
        %v1631 = vpop.f32.mrb[0].mxu0
        %v1632 = vadd.f32 %v1527, %v1631
        %v1633 = vpop.f32.mrb[0].mxu0
        %1634 = vmatprep.mubr.f32.mxu0 %v446
        %1635 = vmatmul.mubr.f32.gmra.mrb[0].mxu0 %v445
        %v1636 = vpop.f32.mrb[0].mxu0
        %v1637 = vadd.f32 %v1532, %v1636
        %v1638 = vpop.f32.mrb[0].mxu0
        %1639 = vmatprep.mubr.f32.mxu0 %v470
        %1640 = vmatmul.mubr.f32.gmra.mrb[0].mxu0 %v469
        %v1641 = vpop.f32.mrb[0].mxu0
        %v1642 = vadd.f32 %v1537, %v1641
        %v1643 = vpop.f32.mrb[0].mxu0
        %1644 = vmatprep.mubr.f32.mxu0 %v494
        %1645 = vmatmul.mubr.f32.gmra.mrb[0].mxu0 %v493
        %v1646 = vpop.f32.mrb[0].mxu0
        %v1647 = vadd.f32 %v1542, %v1646
        %v1648 = vpop.f32.mrb[0].mxu0
        %1649 = vmatprep.mubr.f32.mxu0 %v518
        %1650 = vmatmul.mubr.f32.gmra.mrb[0].mxu0 %v517
        %v1651 = vpop.f32.mrb[0].mxu0
        %v1652 = vadd.f32 %v1547, %v1651
        %v1653 = vpop.f32.mrb[0].mxu0
        %1654 = vdwg.mxu0
        %1655 = vmatprep.subr.mxu0 0.0
        %1656 = vmatpush1.msra.mxu0 %v753
        %1657 = vmatprep.subr.mxu0 0.0
        %1658 = vmatpush1.msra.mxu0 %v754
        %1659 = vmatprep.subr.mxu0 0.0
        %1660 = vmatpush1.msra.mxu0 %v755
        %1661 = vmatprep.subr.mxu0 0.0
        %1662 = vmatpush1.msra.mxu0 %v756
        %1663 = vmatprep.subr.mxu0 0.0
        %1664 = vmatpush1.msra.mxu0 %v757
        %1665 = vmatprep.subr.mxu0 0.0
        %1666 = vmatpush1.msra.mxu0 %v758
        %1667 = vmatprep.subr.mxu0 0.0
        %1668 = vmatpush1.msra.mxu0 %v759
        %1669 = vmatprep.subr.mxu0 0.0
        %1670 = vmatpush1.msra.mxu0 %v760
        %1671 = vmatprep.subr.mxu0 0.0
        %1672 = vmatpush1.msra.mxu0 %v761
        %1673 = vmatprep.subr.mxu0 0.0
        %1674 = vmatpush1.msra.mxu0 %v762
        %1675 = vmatprep.subr.mxu0 0.0
        %1676 = vmatpush1.msra.mxu0 %v763
        %1677 = vmatprep.subr.mxu0 0.0
        %1678 = vmatpush1.msra.mxu0 %v764
        %1679 = vmatprep.subr.mxu0 0.0
        %1680 = vmatpush1.msra.mxu0 %v765
        %1681 = vmatprep.subr.mxu0 0.0
        %1682 = vmatpush1.msra.mxu0 %v766
        %1683 = vmatprep.subr.mxu0 0.0
        %1684 = vmatpush1.msra.mxu0 %v767
        %1685 = vmatprep.subr.mxu0 0.0
        %1686 = vmatpush1.msra.mxu0 %v768
        %1687 = vmatprep.subr.mxu0 0.0
        %1688 = vmatpush1.msra.mxu0 %v769
        %1689 = vmatprep.subr.mxu0 0.0
        %1690 = vmatpush1.msra.mxu0 %v770
        %1691 = vmatprep.subr.mxu0 0.0
        %1692 = vmatpush1.msra.mxu0 %v771
        %1693 = vmatprep.subr.mxu0 0.0
        %1694 = vmatpush1.msra.mxu0 %v772
        %1695 = vmatprep.subr.mxu0 0.0
        %1696 = vmatpush1.msra.mxu0 %v773
        %1697 = vmatprep.subr.mxu0 0.0
        %1698 = vmatpush1.msra.mxu0 %v774
        %1699 = vmatprep.subr.mxu0 0.0
        %1700 = vmatpush1.msra.mxu0 %v775
        %1701 = vmatprep.subr.mxu0 0.0
        %1702 = vmatpush1.msra.mxu0 %v776
        %1703 = vmatprep.subr.mxu0 0.0
        %1704 = vmatpush1.msra.mxu0 %v777
        %1705 = vmatprep.subr.mxu0 0.0
        %1706 = vmatpush1.msra.mxu0 %v778
        %1707 = vmatprep.subr.mxu0 0.0
        %1708 = vmatpush1.msra.mxu0 %v779
        %1709 = vmatprep.subr.mxu0 0.0
        %1710 = vmatpush1.msra.mxu0 %v780
        %1711 = vmatprep.subr.mxu0 0.0
        %1712 = vmatpush1.msra.mxu0 %v781
        %1713 = vmatprep.subr.mxu0 0.0
        %1714 = vmatpush1.msra.mxu0 %v782
        %1715 = vmatprep.subr.mxu0 0.0
        %1716 = vmatpush1.msra.mxu0 %v783
        %1717 = vmatprep.subr.mxu0 0.0
        %1718 = vmatpush1.msra.mxu0 %v784
        %1719 = vmatprep.mubr.f32.mxu0 %v352
        %1720 = vmatmul.mubr.f32.gmra.mrb[0].mxu0 %v351
        %v1721 = vpop.f32.mrb[0].mxu0
        %v1722 = vadd.f32 %v1617, %v1721
        %v1723 = vpop.f32.mrb[0].mxu0
        %1724 = vmatprep.mubr.f32.mxu0 %v376
        %1725 = vmatmul.mubr.f32.gmra.mrb[0].mxu0 %v375
        %v1726 = vpop.f32.mrb[0].mxu0
        %v1727 = vadd.f32 %v1622, %v1726
        %v1728 = vpop.f32.mrb[0].mxu0
        %1729 = vmatprep.mubr.f32.mxu0 %v400
        %1730 = vmatmul.mubr.f32.gmra.mrb[0].mxu0 %v399
        %v1731 = vpop.f32.mrb[0].mxu0
        %v1732 = vadd.f32 %v1627, %v1731
        %v1733 = vpop.f32.mrb[0].mxu0
        %1734 = vmatprep.mubr.f32.mxu0 %v424
        %1735 = vmatmul.mubr.f32.gmra.mrb[0].mxu0 %v423
        %v1736 = vpop.f32.mrb[0].mxu0
        %v1737 = vadd.f32 %v1632, %v1736
        %v1738 = vpop.f32.mrb[0].mxu0
        %1739 = vmatprep.mubr.f32.mxu0 %v448
        %1740 = vmatmul.mubr.f32.gmra.mrb[0].mxu0 %v447
        %v1741 = vpop.f32.mrb[0].mxu0
        %v1742 = vadd.f32 %v1637, %v1741
        %v1743 = vpop.f32.mrb[0].mxu0
        %1744 = vmatprep.mubr.f32.mxu0 %v472
        %1745 = vmatmul.mubr.f32.gmra.mrb[0].mxu0 %v471
        %v1746 = vpop.f32.mrb[0].mxu0
        %v1747 = vadd.f32 %v1642, %v1746
        %v1748 = vpop.f32.mrb[0].mxu0
        %1749 = vmatprep.mubr.f32.mxu0 %v496
        %1750 = vmatmul.mubr.f32.gmra.mrb[0].mxu0 %v495
        %v1751 = vpop.f32.mrb[0].mxu0
        %v1752 = vadd.f32 %v1647, %v1751
        %v1753 = vpop.f32.mrb[0].mxu0
        %1754 = vmatprep.mubr.f32.mxu0 %v520
        %1755 = vmatmul.mubr.f32.gmra.mrb[0].mxu0 %v519
        %v1756 = vpop.f32.mrb[0].mxu0
        %v1757 = vadd.f32 %v1652, %v1756
        %v1758 = vpop.f32.mrb[0].mxu0
        %1759 = vdwg.mxu0
        %1760 = vmatprep.subr.mxu0 0.0
        %1761 = vmatpush1.msra.mxu0 %v785
        %1762 = vmatprep.subr.mxu0 0.0
        %1763 = vmatpush1.msra.mxu0 %v786
        %1764 = vmatprep.subr.mxu0 0.0
        %1765 = vmatpush1.msra.mxu0 %v787
        %1766 = vmatprep.subr.mxu0 0.0
        %1767 = vmatpush1.msra.mxu0 %v788
        %1768 = vmatprep.subr.mxu0 0.0
        %1769 = vmatpush1.msra.mxu0 %v789
        %1770 = vmatprep.subr.mxu0 0.0
        %1771 = vmatpush1.msra.mxu0 %v790
        %1772 = vmatprep.subr.mxu0 0.0
        %1773 = vmatpush1.msra.mxu0 %v791
        %1774 = vmatprep.subr.mxu0 0.0
        %1775 = vmatpush1.msra.mxu0 %v792
        %1776 = vmatprep.subr.mxu0 0.0
        %1777 = vmatpush1.msra.mxu0 %v793
        %1778 = vmatprep.subr.mxu0 0.0
        %1779 = vmatpush1.msra.mxu0 %v794
        %1780 = vmatprep.subr.mxu0 0.0
        %1781 = vmatpush1.msra.mxu0 %v795
        %1782 = vmatprep.subr.mxu0 0.0
        %1783 = vmatpush1.msra.mxu0 %v796
        %1784 = vmatprep.subr.mxu0 0.0
        %1785 = vmatpush1.msra.mxu0 %v797
        %1786 = vmatprep.subr.mxu0 0.0
        %1787 = vmatpush1.msra.mxu0 %v798
        %1788 = vmatprep.subr.mxu0 0.0
        %1789 = vmatpush1.msra.mxu0 %v799
        %1790 = vmatprep.subr.mxu0 0.0
        %1791 = vmatpush1.msra.mxu0 %v800
        %1792 = vmatprep.subr.mxu0 0.0
        %1793 = vmatpush1.msra.mxu0 %v801
        %1794 = vmatprep.subr.mxu0 0.0
        %1795 = vmatpush1.msra.mxu0 %v802
        %1796 = vmatprep.subr.mxu0 0.0
        %1797 = vmatpush1.msra.mxu0 %v803
        %1798 = vmatprep.subr.mxu0 0.0
        %1799 = vmatpush1.msra.mxu0 %v804
        %1800 = vmatprep.subr.mxu0 0.0
        %1801 = vmatpush1.msra.mxu0 %v805
        %1802 = vmatprep.subr.mxu0 0.0
        %1803 = vmatpush1.msra.mxu0 %v806
        %1804 = vmatprep.subr.mxu0 0.0
        %1805 = vmatpush1.msra.mxu0 %v807
        %1806 = vmatprep.subr.mxu0 0.0
        %1807 = vmatpush1.msra.mxu0 %v808
        %1808 = vmatprep.subr.mxu0 0.0
        %1809 = vmatpush1.msra.mxu0 %v809
        %1810 = vmatprep.subr.mxu0 0.0
        %1811 = vmatpush1.msra.mxu0 %v810
        %1812 = vmatprep.subr.mxu0 0.0
        %1813 = vmatpush1.msra.mxu0 %v811
        %1814 = vmatprep.subr.mxu0 0.0
        %1815 = vmatpush1.msra.mxu0 %v812
        %1816 = vmatprep.subr.mxu0 0.0
        %1817 = vmatpush1.msra.mxu0 %v813
        %1818 = vmatprep.subr.mxu0 0.0
        %1819 = vmatpush1.msra.mxu0 %v814
        %1820 = vmatprep.subr.mxu0 0.0
        %1821 = vmatpush1.msra.mxu0 %v815
        %1822 = vmatprep.subr.mxu0 0.0
        %1823 = vmatpush1.msra.mxu0 %v816
        %1824 = vmatprep.mubr.f32.mxu0 %v354
        %1825 = vmatmul.mubr.f32.gmra.mrb[0].mxu0 %v353
        %v1826 = vpop.f32.mrb[0].mxu0
        %v1827 = vadd.f32 %v1722, %v1826
        %v1828 = vpop.f32.mrb[0].mxu0
        %1829 = vmatprep.mubr.f32.mxu0 %v378
        %1830 = vmatmul.mubr.f32.gmra.mrb[0].mxu0 %v377
        %v1831 = vpop.f32.mrb[0].mxu0
        %v1832 = vadd.f32 %v1727, %v1831
        %v1833 = vpop.f32.mrb[0].mxu0
        %1834 = vmatprep.mubr.f32.mxu0 %v402
        %1835 = vmatmul.mubr.f32.gmra.mrb[0].mxu0 %v401
        %v1836 = vpop.f32.mrb[0].mxu0
        %v1837 = vadd.f32 %v1732, %v1836
        %v1838 = vpop.f32.mrb[0].mxu0
        %1839 = vmatprep.mubr.f32.mxu0 %v426
        %1840 = vmatmul.mubr.f32.gmra.mrb[0].mxu0 %v425
        %v1841 = vpop.f32.mrb[0].mxu0
        %v1842 = vadd.f32 %v1737, %v1841
        %v1843 = vpop.f32.mrb[0].mxu0
        %1844 = vmatprep.mubr.f32.mxu0 %v450
        %1845 = vmatmul.mubr.f32.gmra.mrb[0].mxu0 %v449
        %v1846 = vpop.f32.mrb[0].mxu0
        %v1847 = vadd.f32 %v1742, %v1846
        %v1848 = vpop.f32.mrb[0].mxu0
        %1849 = vmatprep.mubr.f32.mxu0 %v474
        %1850 = vmatmul.mubr.f32.gmra.mrb[0].mxu0 %v473
        %v1851 = vpop.f32.mrb[0].mxu0
        %v1852 = vadd.f32 %v1747, %v1851
        %v1853 = vpop.f32.mrb[0].mxu0
        %1854 = vmatprep.mubr.f32.mxu0 %v498
        %1855 = vmatmul.mubr.f32.gmra.mrb[0].mxu0 %v497
        %v1856 = vpop.f32.mrb[0].mxu0
        %v1857 = vadd.f32 %v1752, %v1856
        %v1858 = vpop.f32.mrb[0].mxu0
        %1859 = vmatprep.mubr.f32.mxu0 %v522
        %1860 = vmatmul.mubr.f32.gmra.mrb[0].mxu0 %v521
        %v1861 = vpop.f32.mrb[0].mxu0
        %v1862 = vadd.f32 %v1757, %v1861
        %v1863 = vpop.f32.mrb[0].mxu0
        %1864 = vdwg.mxu0
        %1865 = vmatprep.subr.mxu0 0.0
        %1866 = vmatpush1.msra.mxu0 %v817
        %1867 = vmatprep.subr.mxu0 0.0
        %1868 = vmatpush1.msra.mxu0 %v818
        %1869 = vmatprep.subr.mxu0 0.0
        %1870 = vmatpush1.msra.mxu0 %v819
        %1871 = vmatprep.subr.mxu0 0.0
        %1872 = vmatpush1.msra.mxu0 %v820
        %1873 = vmatprep.subr.mxu0 0.0
        %1874 = vmatpush1.msra.mxu0 %v821
        %1875 = vmatprep.subr.mxu0 0.0
        %1876 = vmatpush1.msra.mxu0 %v822
        %1877 = vmatprep.subr.mxu0 0.0
        %1878 = vmatpush1.msra.mxu0 %v823
        %1879 = vmatprep.subr.mxu0 0.0
        %1880 = vmatpush1.msra.mxu0 %v824
        %1881 = vmatprep.subr.mxu0 0.0
        %1882 = vmatpush1.msra.mxu0 %v825
        %1883 = vmatprep.subr.mxu0 0.0
        %1884 = vmatpush1.msra.mxu0 %v826
        %1885 = vmatprep.subr.mxu0 0.0
        %1886 = vmatpush1.msra.mxu0 %v827
        %1887 = vmatprep.subr.mxu0 0.0
        %1888 = vmatpush1.msra.mxu0 %v828
        %1889 = vmatprep.subr.mxu0 0.0
        %1890 = vmatpush1.msra.mxu0 %v829
        %1891 = vmatprep.subr.mxu0 0.0
        %1892 = vmatpush1.msra.mxu0 %v830
        %1893 = vmatprep.subr.mxu0 0.0
        %1894 = vmatpush1.msra.mxu0 %v831
        %1895 = vmatprep.subr.mxu0 0.0
        %1896 = vmatpush1.msra.mxu0 %v832
        %1897 = vmatprep.subr.mxu0 0.0
        %1898 = vmatpush1.msra.mxu0 %v833
        %1899 = vmatprep.subr.mxu0 0.0
        %1900 = vmatpush1.msra.mxu0 %v834
        %1901 = vmatprep.subr.mxu0 0.0
        %1902 = vmatpush1.msra.mxu0 %v835
        %1903 = vmatprep.subr.mxu0 0.0
        %1904 = vmatpush1.msra.mxu0 %v836
        %1905 = vmatprep.subr.mxu0 0.0
        %1906 = vmatpush1.msra.mxu0 %v837
        %1907 = vmatprep.subr.mxu0 0.0
        %1908 = vmatpush1.msra.mxu0 %v838
        %1909 = vmatprep.subr.mxu0 0.0
        %1910 = vmatpush1.msra.mxu0 %v839
        %1911 = vmatprep.subr.mxu0 0.0
        %1912 = vmatpush1.msra.mxu0 %v840
        %1913 = vmatprep.subr.mxu0 0.0
        %1914 = vmatpush1.msra.mxu0 %v841
        %1915 = vmatprep.subr.mxu0 0.0
        %1916 = vmatpush1.msra.mxu0 %v842
        %1917 = vmatprep.subr.mxu0 0.0
        %1918 = vmatpush1.msra.mxu0 %v843
        %1919 = vmatprep.subr.mxu0 0.0
        %1920 = vmatpush1.msra.mxu0 %v844
        %1921 = vmatprep.subr.mxu0 0.0
        %1922 = vmatpush1.msra.mxu0 %v845
        %1923 = vmatprep.subr.mxu0 0.0
        %1924 = vmatpush1.msra.mxu0 %v846
        %1925 = vmatprep.subr.mxu0 0.0
        %1926 = vmatpush1.msra.mxu0 %v847
        %1927 = vmatprep.subr.mxu0 0.0
        %1928 = vmatpush1.msra.mxu0 %v848
        %1929 = vmatprep.mubr.f32.mxu0 %v356
        %1930 = vmatmul.mubr.f32.gmra.mrb[0].mxu0 %v355
        %v1931 = vpop.f32.mrb[0].mxu0
        %v1932 = vadd.f32 %v1827, %v1931
        %v1933 = vpop.f32.mrb[0].mxu0
        %1934 = vmatprep.mubr.f32.mxu0 %v380
        %1935 = vmatmul.mubr.f32.gmra.mrb[0].mxu0 %v379
        %v1936 = vpop.f32.mrb[0].mxu0
        %v1937 = vadd.f32 %v1832, %v1936
        %v1938 = vpop.f32.mrb[0].mxu0
        %1939 = vmatprep.mubr.f32.mxu0 %v404
        %1940 = vmatmul.mubr.f32.gmra.mrb[0].mxu0 %v403
        %v1941 = vpop.f32.mrb[0].mxu0
        %v1942 = vadd.f32 %v1837, %v1941
        %v1943 = vpop.f32.mrb[0].mxu0
        %1944 = vmatprep.mubr.f32.mxu0 %v428
        %1945 = vmatmul.mubr.f32.gmra.mrb[0].mxu0 %v427
        %v1946 = vpop.f32.mrb[0].mxu0
        %v1947 = vadd.f32 %v1842, %v1946
        %v1948 = vpop.f32.mrb[0].mxu0
        %1949 = vmatprep.mubr.f32.mxu0 %v452
        %1950 = vmatmul.mubr.f32.gmra.mrb[0].mxu0 %v451
        %v1951 = vpop.f32.mrb[0].mxu0
        %v1952 = vadd.f32 %v1847, %v1951
        %v1953 = vpop.f32.mrb[0].mxu0
        %1954 = vmatprep.mubr.f32.mxu0 %v476
        %1955 = vmatmul.mubr.f32.gmra.mrb[0].mxu0 %v475
        %v1956 = vpop.f32.mrb[0].mxu0
        %v1957 = vadd.f32 %v1852, %v1956
        %v1958 = vpop.f32.mrb[0].mxu0
        %1959 = vmatprep.mubr.f32.mxu0 %v500
        %1960 = vmatmul.mubr.f32.gmra.mrb[0].mxu0 %v499
        %v1961 = vpop.f32.mrb[0].mxu0
        %v1962 = vadd.f32 %v1857, %v1961
        %v1963 = vpop.f32.mrb[0].mxu0
        %1964 = vmatprep.mubr.f32.mxu0 %v524
        %1965 = vmatmul.mubr.f32.gmra.mrb[0].mxu0 %v523
        %v1966 = vpop.f32.mrb[0].mxu0
        %v1967 = vadd.f32 %v1862, %v1966
        %v1968 = vpop.f32.mrb[0].mxu0
        %1969 = vdwg.mxu0
        %1970 = vmatprep.subr.mxu0 0.0
        %1971 = vmatpush1.msra.mxu0 %v849
        %1972 = vmatprep.subr.mxu0 0.0
        %1973 = vmatpush1.msra.mxu0 %v850
        %1974 = vmatprep.subr.mxu0 0.0
        %1975 = vmatpush1.msra.mxu0 %v851
        %1976 = vmatprep.subr.mxu0 0.0
        %1977 = vmatpush1.msra.mxu0 %v852
        %1978 = vmatprep.subr.mxu0 0.0
        %1979 = vmatpush1.msra.mxu0 %v853
        %1980 = vmatprep.subr.mxu0 0.0
        %1981 = vmatpush1.msra.mxu0 %v854
        %1982 = vmatprep.subr.mxu0 0.0
        %1983 = vmatpush1.msra.mxu0 %v855
        %1984 = vmatprep.subr.mxu0 0.0
        %1985 = vmatpush1.msra.mxu0 %v856
        %1986 = vmatprep.subr.mxu0 0.0
        %1987 = vmatpush1.msra.mxu0 %v857
        %1988 = vmatprep.subr.mxu0 0.0
        %1989 = vmatpush1.msra.mxu0 %v858
        %1990 = vmatprep.subr.mxu0 0.0
        %1991 = vmatpush1.msra.mxu0 %v859
        %1992 = vmatprep.subr.mxu0 0.0
        %1993 = vmatpush1.msra.mxu0 %v860
        %1994 = vmatprep.subr.mxu0 0.0
        %1995 = vmatpush1.msra.mxu0 %v861
        %1996 = vmatprep.subr.mxu0 0.0
        %1997 = vmatpush1.msra.mxu0 %v862
        %1998 = vmatprep.subr.mxu0 0.0
        %1999 = vmatpush1.msra.mxu0 %v863
        %2000 = vmatprep.subr.mxu0 0.0
        %2001 = vmatpush1.msra.mxu0 %v864
        %2002 = vmatprep.subr.mxu0 0.0
        %2003 = vmatpush1.msra.mxu0 %v865
        %2004 = vmatprep.subr.mxu0 0.0
        %2005 = vmatpush1.msra.mxu0 %v866
        %2006 = vmatprep.subr.mxu0 0.0
        %2007 = vmatpush1.msra.mxu0 %v867
        %2008 = vmatprep.subr.mxu0 0.0
        %2009 = vmatpush1.msra.mxu0 %v868
        %2010 = vmatprep.subr.mxu0 0.0
        %2011 = vmatpush1.msra.mxu0 %v869
        %2012 = vmatprep.subr.mxu0 0.0
        %2013 = vmatpush1.msra.mxu0 %v870
        %2014 = vmatprep.subr.mxu0 0.0
        %2015 = vmatpush1.msra.mxu0 %v871
        %2016 = vmatprep.subr.mxu0 0.0
        %2017 = vmatpush1.msra.mxu0 %v872
        %2018 = vmatprep.subr.mxu0 0.0
        %2019 = vmatpush1.msra.mxu0 %v873
        %2020 = vmatprep.subr.mxu0 0.0
        %2021 = vmatpush1.msra.mxu0 %v874
        %2022 = vmatprep.subr.mxu0 0.0
        %2023 = vmatpush1.msra.mxu0 %v875
        %2024 = vmatprep.subr.mxu0 0.0
        %2025 = vmatpush1.msra.mxu0 %v876
        %2026 = vmatprep.subr.mxu0 0.0
        %2027 = vmatpush1.msra.mxu0 %v877
        %2028 = vmatprep.subr.mxu0 0.0
        %2029 = vmatpush1.msra.mxu0 %v878
        %2030 = vmatprep.subr.mxu0 0.0
        %2031 = vmatpush1.msra.mxu0 %v879
        %2032 = vmatprep.subr.mxu0 0.0
        %2033 = vmatpush1.msra.mxu0 %v880
        %2034 = vmatprep.mubr.f32.mxu0 %v358
        %2035 = vmatmul.mubr.f32.gmra.mrb[0].mxu0 %v357
        %v2036 = vpop.f32.mrb[0].mxu0
        %v2037 = vadd.f32 %v1932, %v2036
        %v2038 = vpop.f32.mrb[0].mxu0
        %2039 = vmatprep.mubr.f32.mxu0 %v382
        %2040 = vmatmul.mubr.f32.gmra.mrb[0].mxu0 %v381
        %v2041 = vpop.f32.mrb[0].mxu0
        %v2042 = vadd.f32 %v1937, %v2041
        %v2043 = vpop.f32.mrb[0].mxu0
        %2044 = vmatprep.mubr.f32.mxu0 %v406
        %2045 = vmatmul.mubr.f32.gmra.mrb[0].mxu0 %v405
        %v2046 = vpop.f32.mrb[0].mxu0
        %v2047 = vadd.f32 %v1942, %v2046
        %v2048 = vpop.f32.mrb[0].mxu0
        %2049 = vmatprep.mubr.f32.mxu0 %v430
        %2050 = vmatmul.mubr.f32.gmra.mrb[0].mxu0 %v429
        %v2051 = vpop.f32.mrb[0].mxu0
        %v2052 = vadd.f32 %v1947, %v2051
        %v2053 = vpop.f32.mrb[0].mxu0
        %2054 = vmatprep.mubr.f32.mxu0 %v454
        %2055 = vmatmul.mubr.f32.gmra.mrb[0].mxu0 %v453
        %v2056 = vpop.f32.mrb[0].mxu0
        %v2057 = vadd.f32 %v1952, %v2056
        %v2058 = vpop.f32.mrb[0].mxu0
        %2059 = vmatprep.mubr.f32.mxu0 %v478
        %2060 = vmatmul.mubr.f32.gmra.mrb[0].mxu0 %v477
        %v2061 = vpop.f32.mrb[0].mxu0
        %v2062 = vadd.f32 %v1957, %v2061
        %v2063 = vpop.f32.mrb[0].mxu0
        %2064 = vmatprep.mubr.f32.mxu0 %v502
        %2065 = vmatmul.mubr.f32.gmra.mrb[0].mxu0 %v501
        %v2066 = vpop.f32.mrb[0].mxu0
        %v2067 = vadd.f32 %v1962, %v2066
        %v2068 = vpop.f32.mrb[0].mxu0
        %2069 = vmatprep.mubr.f32.mxu0 %v526
        %2070 = vmatmul.mubr.f32.gmra.mrb[0].mxu0 %v525
        %v2071 = vpop.f32.mrb[0].mxu0
        %v2072 = vadd.f32 %v1967, %v2071
        %v2073 = vpop.f32.mrb[0].mxu0
        %2074 = vdwg.mxu0
        %2075 = vmatprep.subr.mxu0 0.0
        %2076 = vmatpush1.msra.mxu0 %v881
        %2077 = vmatprep.subr.mxu0 0.0
        %2078 = vmatpush1.msra.mxu0 %v882
        %2079 = vmatprep.subr.mxu0 0.0
        %2080 = vmatpush1.msra.mxu0 %v883
        %2081 = vmatprep.subr.mxu0 0.0
        %2082 = vmatpush1.msra.mxu0 %v884
        %2083 = vmatprep.subr.mxu0 0.0
        %2084 = vmatpush1.msra.mxu0 %v885
        %2085 = vmatprep.subr.mxu0 0.0
        %2086 = vmatpush1.msra.mxu0 %v886
        %2087 = vmatprep.subr.mxu0 0.0
        %2088 = vmatpush1.msra.mxu0 %v887
        %2089 = vmatprep.subr.mxu0 0.0
        %2090 = vmatpush1.msra.mxu0 %v888
        %2091 = vmatprep.subr.mxu0 0.0
        %2092 = vmatpush1.msra.mxu0 %v889
        %2093 = vmatprep.subr.mxu0 0.0
        %2094 = vmatpush1.msra.mxu0 %v890
        %2095 = vmatprep.subr.mxu0 0.0
        %2096 = vmatpush1.msra.mxu0 %v891
        %2097 = vmatprep.subr.mxu0 0.0
        %2098 = vmatpush1.msra.mxu0 %v892
        %2099 = vmatprep.subr.mxu0 0.0
        %2100 = vmatpush1.msra.mxu0 %v893
        %2101 = vmatprep.subr.mxu0 0.0
        %2102 = vmatpush1.msra.mxu0 %v894
        %2103 = vmatprep.subr.mxu0 0.0
        %2104 = vmatpush1.msra.mxu0 %v895
        %2105 = vmatprep.subr.mxu0 0.0
        %2106 = vmatpush1.msra.mxu0 %v896
        %2107 = vmatprep.subr.mxu0 0.0
        %2108 = vmatpush1.msra.mxu0 %v897
        %2109 = vmatprep.subr.mxu0 0.0
        %2110 = vmatpush1.msra.mxu0 %v898
        %2111 = vmatprep.subr.mxu0 0.0
        %2112 = vmatpush1.msra.mxu0 %v899
        %2113 = vmatprep.subr.mxu0 0.0
        %2114 = vmatpush1.msra.mxu0 %v900
        %2115 = vmatprep.subr.mxu0 0.0
        %2116 = vmatpush1.msra.mxu0 %v901
        %2117 = vmatprep.subr.mxu0 0.0
        %2118 = vmatpush1.msra.mxu0 %v902
        %2119 = vmatprep.subr.mxu0 0.0
        %2120 = vmatpush1.msra.mxu0 %v903
        %2121 = vmatprep.subr.mxu0 0.0
        %2122 = vmatpush1.msra.mxu0 %v904
        %2123 = vmatprep.subr.mxu0 0.0
        %2124 = vmatpush1.msra.mxu0 %v905
        %2125 = vmatprep.subr.mxu0 0.0
        %2126 = vmatpush1.msra.mxu0 %v906
        %2127 = vmatprep.subr.mxu0 0.0
        %2128 = vmatpush1.msra.mxu0 %v907
        %2129 = vmatprep.subr.mxu0 0.0
        %2130 = vmatpush1.msra.mxu0 %v908
        %2131 = vmatprep.subr.mxu0 0.0
        %2132 = vmatpush1.msra.mxu0 %v909
        %2133 = vmatprep.subr.mxu0 0.0
        %2134 = vmatpush1.msra.mxu0 %v910
        %2135 = vmatprep.subr.mxu0 0.0
        %2136 = vmatpush1.msra.mxu0 %v911
        %2137 = vmatprep.subr.mxu0 0.0
        %2138 = vmatpush1.msra.mxu0 %v912
        %2139 = vmatprep.mubr.f32.mxu0 %v360
        %2140 = vmatmul.mubr.f32.gmra.mrb[0].mxu0 %v359
        %v2141 = vpop.f32.mrb[0].mxu0
        %v2142 = vadd.f32 %v2037, %v2141
        %v2143 = vpop.f32.mrb[0].mxu0
        %2144 = vmatprep.mubr.f32.mxu0 %v384
        %2145 = vmatmul.mubr.f32.gmra.mrb[0].mxu0 %v383
        %v2146 = vpop.f32.mrb[0].mxu0
        %v2147 = vadd.f32 %v2042, %v2146
        %v2148 = vpop.f32.mrb[0].mxu0
        %2149 = vmatprep.mubr.f32.mxu0 %v408
        %2150 = vmatmul.mubr.f32.gmra.mrb[0].mxu0 %v407
        %v2151 = vpop.f32.mrb[0].mxu0
        %v2152 = vadd.f32 %v2047, %v2151
        %v2153 = vpop.f32.mrb[0].mxu0
        %2154 = vmatprep.mubr.f32.mxu0 %v432
        %2155 = vmatmul.mubr.f32.gmra.mrb[0].mxu0 %v431
        %v2156 = vpop.f32.mrb[0].mxu0
        %v2157 = vadd.f32 %v2052, %v2156
        %v2158 = vpop.f32.mrb[0].mxu0
        %2159 = vmatprep.mubr.f32.mxu0 %v456
        %2160 = vmatmul.mubr.f32.gmra.mrb[0].mxu0 %v455
        %v2161 = vpop.f32.mrb[0].mxu0
        %v2162 = vadd.f32 %v2057, %v2161
        %v2163 = vpop.f32.mrb[0].mxu0
        %2164 = vmatprep.mubr.f32.mxu0 %v480
        %2165 = vmatmul.mubr.f32.gmra.mrb[0].mxu0 %v479
        %v2166 = vpop.f32.mrb[0].mxu0
        %v2167 = vadd.f32 %v2062, %v2166
        %v2168 = vpop.f32.mrb[0].mxu0
        %2169 = vmatprep.mubr.f32.mxu0 %v504
        %2170 = vmatmul.mubr.f32.gmra.mrb[0].mxu0 %v503
        %v2171 = vpop.f32.mrb[0].mxu0
        %v2172 = vadd.f32 %v2067, %v2171
        %v2173 = vpop.f32.mrb[0].mxu0
        %2174 = vmatprep.mubr.f32.mxu0 %v528
        %2175 = vmatmul.mubr.f32.gmra.mrb[0].mxu0 %v527
        %v2176 = vpop.f32.mrb[0].mxu0
        %v2177 = vadd.f32 %v2072, %v2176
        %v2178 = vpop.f32.mrb[0].mxu0
        %2179 = vdwg.mxu0
        %v2180 = vld [vmem:[#allocation9] sm:$0x1]
        %v2181 = vxor.u32 %v2180, 2147483648
        %v2182 = vmul.f32 %v2181, 1.442695
        %v2183 = vpow.pop %v2182
        %v2184 = vadd.f32 %v2183, 1.0
        %v2185 = vrcp.pop %v2184
        %v2186 = vmul.f32 1.0, %v2185
        %v2188 = vlaneseq
        %v2189 = vshrl.u32 %v2188, 7
        %v2190 = vsub.s32 0, %v2189
        %v2191 = vrot.slane %v2186, %v2190
        %v2193 = vmul.f32 %v2191, 0.0
        %v2194 = vadd.f32 %v2193, %v2142
        %v2195 = vxor.u32 %v2194, 2147483648
        %v2196 = vmul.f32 %v2195, 1.442695
        %v2197 = vpow.pop %v2196
        %v2198 = vadd.f32 %v2197, 1.0
        %v2199 = vrcp.pop %v2198
        %v2200 = vmul.f32 1.0, %v2199
        %v2201 = vmul.f32 %v2194, %v2200
        %2202 = vst [vmem:[#allocation2] sm:$0xff] %v2201
        %v2203 = vmul.f32 %v2191, %v2194
        %v2204 = vadd.f32 %v2203, %v2147
        %v2205 = vxor.u32 %v2204, 2147483648
        %v2206 = vmul.f32 %v2205, 1.442695
        %v2207 = vpow.pop %v2206
        %v2208 = vadd.f32 %v2207, 1.0
        %v2209 = vrcp.pop %v2208
        %v2210 = vmul.f32 1.0, %v2209
        %v2211 = vmul.f32 %v2204, %v2210
        %2212 = vst [vmem:[#allocation2 + $0x8] sm:$0xff] %v2211
        %v2213 = vmul.f32 %v2191, %v2204
        %v2214 = vadd.f32 %v2213, %v2152
        %v2215 = vxor.u32 %v2214, 2147483648
        %v2216 = vmul.f32 %v2215, 1.442695
        %v2217 = vpow.pop %v2216
        %v2218 = vadd.f32 %v2217, 1.0
        %v2219 = vrcp.pop %v2218
        %v2220 = vmul.f32 1.0, %v2219
        %v2221 = vmul.f32 %v2214, %v2220
        %2222 = vst [vmem:[#allocation2 + $0x10] sm:$0xff] %v2221
        %v2223 = vmul.f32 %v2191, %v2214
        %v2224 = vadd.f32 %v2223, %v2157
        %v2225 = vxor.u32 %v2224, 2147483648
        %v2226 = vmul.f32 %v2225, 1.442695
        %v2227 = vpow.pop %v2226
        %v2228 = vadd.f32 %v2227, 1.0
        %v2229 = vrcp.pop %v2228
        %v2230 = vmul.f32 1.0, %v2229
        %v2231 = vmul.f32 %v2224, %v2230
        %2232 = vst [vmem:[#allocation2 + $0x18] sm:$0xff] %v2231
        %v2233 = vmul.f32 %v2191, %v2224
        %v2234 = vadd.f32 %v2233, %v2162
        %v2235 = vxor.u32 %v2234, 2147483648
        %v2236 = vmul.f32 %v2235, 1.442695
        %v2237 = vpow.pop %v2236
        %v2238 = vadd.f32 %v2237, 1.0
        %v2239 = vrcp.pop %v2238
        %v2240 = vmul.f32 1.0, %v2239
        %v2241 = vmul.f32 %v2234, %v2240
        %2242 = vst [vmem:[#allocation2 + $0x20] sm:$0xff] %v2241
        %v2243 = vmul.f32 %v2191, %v2234
        %v2244 = vadd.f32 %v2243, %v2167
        %v2245 = vxor.u32 %v2244, 2147483648
        %v2246 = vmul.f32 %v2245, 1.442695
        %v2247 = vpow.pop %v2246
        %v2248 = vadd.f32 %v2247, 1.0
        %v2249 = vrcp.pop %v2248
        %v2250 = vmul.f32 1.0, %v2249
        %v2251 = vmul.f32 %v2244, %v2250
        %2252 = vst [vmem:[#allocation2 + $0x28] sm:$0xff] %v2251
        %v2253 = vmul.f32 %v2191, %v2244
        %v2254 = vadd.f32 %v2253, %v2172
        %v2255 = vxor.u32 %v2254, 2147483648
        %v2256 = vmul.f32 %v2255, 1.442695
        %v2257 = vpow.pop %v2256
        %v2258 = vadd.f32 %v2257, 1.0
        %v2259 = vrcp.pop %v2258
        %v2260 = vmul.f32 1.0, %v2259
        %v2261 = vmul.f32 %v2254, %v2260
        %2262 = vst [vmem:[#allocation2 + $0x30] sm:$0xff] %v2261
        %v2263 = vmul.f32 %v2191, %v2254
        %v2264 = vadd.f32 %v2263, %v2177
        %v2265 = vxor.u32 %v2264, 2147483648
        %v2266 = vmul.f32 %v2265, 1.442695
        %v2267 = vpow.pop %v2266
        %v2268 = vadd.f32 %v2267, 1.0
        %v2269 = vrcp.pop %v2268
        %v2270 = vmul.f32 1.0, %v2269
        %v2271 = vmul.f32 %v2264, %v2270
        %2272 = vst [vmem:[#allocation2 + $0x38] sm:$0xff] %v2271
        %v2273 = vld [vmem:[#allocation2] sm:$0xff]
        %v2274 = vld [vmem:[#allocation2 + $0x8] sm:$0xff]
        %v2275 = vld [vmem:[#allocation2 + $0x10] sm:$0xff]
        %v2276 = vld [vmem:[#allocation2 + $0x18] sm:$0xff]
        %v2277 = vld [vmem:[#allocation2 + $0x20] sm:$0xff]
        %v2278 = vld [vmem:[#allocation2 + $0x28] sm:$0xff]
        %v2279 = vld [vmem:[#allocation2 + $0x30] sm:$0xff]
        %v2280 = vld [vmem:[#allocation2 + $0x38] sm:$0xff]
        %v2281 = vld [vmem:[#allocation11] sm:$0xff]
        %v2282 = vld [vmem:[#allocation11 + $0x8] sm:$0xff]
        %v2283 = vld [vmem:[#allocation11 + $0x10] sm:$0xff]
        %v2284 = vld [vmem:[#allocation11 + $0x18] sm:$0xff]
        %v2285 = vld [vmem:[#allocation11 + $0x20] sm:$0xff]
        %v2286 = vld [vmem:[#allocation11 + $0x28] sm:$0xff]
        %v2287 = vld [vmem:[#allocation11 + $0x30] sm:$0xff]
        %v2288 = vld [vmem:[#allocation11 + $0x38] sm:$0xff]
        %v2289 = vld [vmem:[#allocation11 + $0x40] sm:$0xff]
        %v2290 = vld [vmem:[#allocation11 + $0x48] sm:$0xff]
        %v2291 = vld [vmem:[#allocation11 + $0x50] sm:$0xff]
        %v2292 = vld [vmem:[#allocation11 + $0x58] sm:$0xff]
        %v2293 = vld [vmem:[#allocation11 + $0x60] sm:$0xff]
        %v2294 = vld [vmem:[#allocation11 + $0x68] sm:$0xff]
        %v2295 = vld [vmem:[#allocation11 + $0x70] sm:$0xff]
        %v2296 = vld [vmem:[#allocation11 + $0x78] sm:$0xff]
        %v2297 = vld [vmem:[#allocation12] sm:$0x1]
        %v2299 = vlaneseq
        %v2300 = vshrl.u32 %v2299, 7
        %v2301 = vsub.s32 0, %v2300
        %v2302 = vrot.slane %v2297, %v2301
        %2304 = vmatprep.subr.mxu0 0.0
        %2305 = vmatpush1.msra.mxu0 %v2281
        %2306 = vmatprep.subr.mxu0 0.0
        %2307 = vmatpush1.msra.mxu0 %v2282
        %2308 = vmatprep.subr.mxu0 0.0
        %2309 = vmatpush1.msra.mxu0 %v2283
        %2310 = vmatprep.subr.mxu0 0.0
        %2311 = vmatpush1.msra.mxu0 %v2284
        %2312 = vmatprep.subr.mxu0 0.0
        %2313 = vmatpush1.msra.mxu0 %v2285
        %2314 = vmatprep.subr.mxu0 0.0
        %2315 = vmatpush1.msra.mxu0 %v2286
        %2316 = vmatprep.subr.mxu0 0.0
        %2317 = vmatpush1.msra.mxu0 %v2287
        %2318 = vmatprep.subr.mxu0 0.0
        %2319 = vmatpush1.msra.mxu0 %v2288
        %2320 = vmatprep.subr.mxu0 0.0
        %2321 = vmatpush1.msra.mxu0 %v2289
        %2322 = vmatprep.subr.mxu0 0.0
        %2323 = vmatpush1.msra.mxu0 %v2290
        %2324 = vmatprep.subr.mxu0 0.0
        %2325 = vmatpush1.msra.mxu0 %v2291
        %2326 = vmatprep.subr.mxu0 0.0
        %2327 = vmatpush1.msra.mxu0 %v2292
        %2328 = vmatprep.subr.mxu0 0.0
        %2329 = vmatpush1.msra.mxu0 %v2293
        %2330 = vmatprep.subr.mxu0 0.0
        %2331 = vmatpush1.msra.mxu0 %v2294
        %2332 = vmatprep.subr.mxu0 0.0
        %2333 = vmatpush1.msra.mxu0 %v2295
        %2334 = vmatprep.subr.mxu0 0.0
        %2335 = vmatpush1.msra.mxu0 %v2296
        %2336 = vmatprep.subr.mxu0 0.0
        %2337 = vmatpush1.msra.mxu0 0.0
        %2338 = vmatprep.subr.mxu0 0.0
        %2339 = vmatpush1.msra.mxu0 0.0
        %2340 = vmatprep.subr.mxu0 0.0
        %2341 = vmatpush1.msra.mxu0 0.0
        %2342 = vmatprep.subr.mxu0 0.0
        %2343 = vmatpush1.msra.mxu0 0.0
        %2344 = vmatprep.subr.mxu0 0.0
        %2345 = vmatpush1.msra.mxu0 0.0
        %2346 = vmatprep.subr.mxu0 0.0
        %2347 = vmatpush1.msra.mxu0 0.0
        %2348 = vmatprep.subr.mxu0 0.0
        %2349 = vmatpush1.msra.mxu0 0.0
        %2350 = vmatprep.subr.mxu0 0.0
        %2351 = vmatpush1.msra.mxu0 0.0
        %2352 = vmatprep.subr.mxu0 0.0
        %2353 = vmatpush1.msra.mxu0 0.0
        %2354 = vmatprep.subr.mxu0 0.0
        %2355 = vmatpush1.msra.mxu0 0.0
        %2356 = vmatprep.subr.mxu0 0.0
        %2357 = vmatpush1.msra.mxu0 0.0
        %2358 = vmatprep.subr.mxu0 0.0
        %2359 = vmatpush1.msra.mxu0 0.0
        %2360 = vmatprep.subr.mxu0 0.0
        %2361 = vmatpush1.msra.mxu0 0.0
        %2362 = vmatprep.subr.mxu0 0.0
        %2363 = vmatpush1.msra.mxu0 0.0
        %2364 = vmatprep.subr.mxu0 0.0
        %2365 = vmatpush1.msra.mxu0 0.0
        %2366 = vmatprep.subr.mxu0 0.0
        %2367 = vmatpush1.msra.mxu0 0.0
        %2368 = vmatprep.mubr.f32.mxu0 0.0
        %2369 = vmatmul.mubr.f32.gmra.mrb[0].mxu0 %v2273
        %v2370 = vpop.f32.mrb[0].mxu0
        %v2371 = vadd.f32 %v2302, %v2370
        %v2372 = vpop.f32.mrb[0].mxu0
        %2373 = vmatprep.mubr.f32.mxu0 0.0
        %2374 = vmatmul.mubr.f32.gmra.mrb[0].mxu0 %v2274
        %v2375 = vpop.f32.mrb[0].mxu0
        %v2376 = vadd.f32 %v2302, %v2375
        %v2377 = vpop.f32.mrb[0].mxu0
        %2378 = vmatprep.mubr.f32.mxu0 0.0
        %2379 = vmatmul.mubr.f32.gmra.mrb[0].mxu0 %v2275
        %v2380 = vpop.f32.mrb[0].mxu0
        %v2381 = vadd.f32 %v2302, %v2380
        %v2382 = vpop.f32.mrb[0].mxu0
        %2383 = vmatprep.mubr.f32.mxu0 0.0
        %2384 = vmatmul.mubr.f32.gmra.mrb[0].mxu0 %v2276
        %v2385 = vpop.f32.mrb[0].mxu0
        %v2386 = vadd.f32 %v2302, %v2385
        %v2387 = vpop.f32.mrb[0].mxu0
        %2388 = vmatprep.mubr.f32.mxu0 0.0
        %2389 = vmatmul.mubr.f32.gmra.mrb[0].mxu0 %v2277
        %v2390 = vpop.f32.mrb[0].mxu0
        %v2391 = vadd.f32 %v2302, %v2390
        %v2392 = vpop.f32.mrb[0].mxu0
        %2393 = vmatprep.mubr.f32.mxu0 0.0
        %2394 = vmatmul.mubr.f32.gmra.mrb[0].mxu0 %v2278
        %v2395 = vpop.f32.mrb[0].mxu0
        %v2396 = vadd.f32 %v2302, %v2395
        %v2397 = vpop.f32.mrb[0].mxu0
        %2398 = vmatprep.mubr.f32.mxu0 0.0
        %2399 = vmatmul.mubr.f32.gmra.mrb[0].mxu0 %v2279
        %v2400 = vpop.f32.mrb[0].mxu0
        %v2401 = vadd.f32 %v2302, %v2400
        %v2402 = vpop.f32.mrb[0].mxu0
        %2403 = vmatprep.mubr.f32.mxu0 0.0
        %2404 = vmatmul.mubr.f32.gmra.mrb[0].mxu0 %v2280
        %v2405 = vpop.f32.mrb[0].mxu0
        %v2406 = vadd.f32 %v2302, %v2405
        %v2407 = vpop.f32.mrb[0].mxu0
        %2408 = vdwg.mxu0
        %2409 = vmax.xlane.f32.xlu0 %v2371
        %v2410 = vpop.xlane.xlu0 %2409
        %2411 = vmax.xlane.f32.xlu0 %v2376
        %v2412 = vpop.xlane.xlu0 %2411
        %2413 = vmax.xlane.f32.xlu0 %v2381
        %v2414 = vpop.xlane.xlu0 %2413
        %2415 = vmax.xlane.f32.xlu0 %v2386
        %v2416 = vpop.xlane.xlu0 %2415
        %2417 = vmax.xlane.f32.xlu0 %v2391
        %v2418 = vpop.xlane.xlu0 %2417
        %2419 = vmax.xlane.f32.xlu0 %v2396
        %v2420 = vpop.xlane.xlu0 %2419
        %2421 = vmax.xlane.f32.xlu0 %v2401
        %v2422 = vpop.xlane.xlu0 %2421
        %2423 = vmax.xlane.f32.xlu0 %v2406
        %v2424 = vpop.xlane.xlu0 %2423
        %v2425 = vsub.f32 %v2371, %v2410
        %v2426 = vsub.f32 %v2376, %v2412
        %v2427 = vsub.f32 %v2381, %v2414
        %v2428 = vsub.f32 %v2386, %v2416
        %v2429 = vsub.f32 %v2391, %v2418
        %v2430 = vsub.f32 %v2396, %v2420
        %v2431 = vsub.f32 %v2401, %v2422
        %v2432 = vsub.f32 %v2406, %v2424
        %v2433 = vmul.f32 %v2425, 1.442695
        %v2434 = vpow.pop %v2433
        %v2435 = vmul.f32 %v2426, 1.442695
        %v2436 = vpow.pop %v2435
        %v2437 = vmul.f32 %v2427, 1.442695
        %v2438 = vpow.pop %v2437
        %v2439 = vmul.f32 %v2428, 1.442695
        %v2440 = vpow.pop %v2439
        %v2441 = vmul.f32 %v2429, 1.442695
        %v2442 = vpow.pop %v2441
        %v2443 = vmul.f32 %v2430, 1.442695
        %v2444 = vpow.pop %v2443
        %v2445 = vmul.f32 %v2431, 1.442695
        %v2446 = vpow.pop %v2445
        %v2447 = vmul.f32 %v2432, 1.442695
        %v2448 = vpow.pop %v2447
        %2449 = vadd.xlane.f32.xlu0 %v2434
        %v2450 = vpop.xlane.xlu0 %2449
        %2451 = vadd.xlane.f32.xlu0 %v2436
        %v2452 = vpop.xlane.xlu0 %2451
        %2453 = vadd.xlane.f32.xlu0 %v2438
        %v2454 = vpop.xlane.xlu0 %2453
        %2455 = vadd.xlane.f32.xlu0 %v2440
        %v2456 = vpop.xlane.xlu0 %2455
        %2457 = vadd.xlane.f32.xlu0 %v2442
        %v2458 = vpop.xlane.xlu0 %2457
        %2459 = vadd.xlane.f32.xlu0 %v2444
        %v2460 = vpop.xlane.xlu0 %2459
        %2461 = vadd.xlane.f32.xlu0 %v2446
        %v2462 = vpop.xlane.xlu0 %2461
        %2463 = vadd.xlane.f32.xlu0 %v2448
        %v2464 = vpop.xlane.xlu0 %2463
        %v2465 = vrcp.pop %v2450
        %v2466 = vmul.f32 1.0, %v2465
        %v2467 = vrcp.pop %v2452
        %v2468 = vmul.f32 1.0, %v2467
        %v2469 = vrcp.pop %v2454
        %v2470 = vmul.f32 1.0, %v2469
        %v2471 = vrcp.pop %v2456
        %v2472 = vmul.f32 1.0, %v2471
        %v2473 = vrcp.pop %v2458
        %v2474 = vmul.f32 1.0, %v2473
        %v2475 = vrcp.pop %v2460
        %v2476 = vmul.f32 1.0, %v2475
        %v2477 = vrcp.pop %v2462
        %v2478 = vmul.f32 1.0, %v2477
        %v2479 = vrcp.pop %v2464
        %v2480 = vmul.f32 1.0, %v2479
        %v2481 = vmul.f32 %v2434, %v2466
        %v2482 = vmul.f32 %v2436, %v2468
        %v2483 = vmul.f32 %v2438, %v2470
        %v2484 = vmul.f32 %v2440, %v2472
        %v2485 = vmul.f32 %v2442, %v2474
        %v2486 = vmul.f32 %v2444, %v2476
        %v2487 = vmul.f32 %v2446, %v2478
        %v2488 = vmul.f32 %v2448, %v2480
        %2489 = vst [vmem:[%s336] sm:$0xff] %v2481
        %2490 = vst [vmem:[%s336 + $0x8] sm:$0xff] %v2482
        %2491 = vst [vmem:[%s336 + $0x10] sm:$0xff] %v2483
        %2492 = vst [vmem:[%s336 + $0x18] sm:$0xff] %v2484
        %2493 = vst [vmem:[%s336 + $0x20] sm:$0xff] %v2485
        %2494 = vst [vmem:[%s336 + $0x28] sm:$0xff] %v2486
        %2495 = vst [vmem:[%s336 + $0x30] sm:$0xff] %v2487
        %2496 = vst [vmem:[%s336 + $0x38] sm:$0xff] %v2488
        %s2497 = sand.u32 %s165, 1
        %s2498 = scalar_lea.sflag [#allocation5], %s2497
        %s2499 = sand.u32 %s165, 1
        %s2500 = smul.addr %s2499, 64
        %s2501 = scalar_lea.vmem [#allocation14], %s2500
        // Predicated region
        $region69: #{tpu_custom_call.1} parent=43 // pred_check
          %p2502 = pneg %p175
        $region70: #{tpu_custom_call.1} parent=43 // pred_check_branch
          %2504 = sbr.rel (%p2502) target = $region72
        $region71: #{tpu_custom_call.1} parent=43 // pred_region
          %s2506 = ssub.s32 1024, 1024
          %2507 = vsyncadd %s2498, %s2506
          %s2508 = smul.addr %s26, 128
          %s2509 = scalar_lea.hbm %s6, %s2508
          %s2510 = sshll.u32 %s2501, 4
          %s2511 = int_to_ptr.vmem [resolvable:$true] %s2510
          %2516 = dma.vmem_to_hbm [thread:$0]  %s2511, 1024, %s2509, %s2498, 128, 256, 8
        $region72: #{tpu_custom_call.1} parent=43 // pred_fallthru
          _
      $region44: #{tpu_custom_call.1} parent=5 // pred_fallthru
        _
      %p2517 = scmp.le.s32.totalorder 2, %s21
      // Predicated region
      $region73: #{tpu_custom_call.1} parent=5 // pred_check
        %p2518 = pneg %p2517
      $region74: #{tpu_custom_call.1} parent=5 // pred_check_branch
        %2520 = sbr.rel (%p2518) target = $region76
      $region75: #{tpu_custom_call.1} parent=5 // pred_region
        %s2521 = ssub.s32 %s21, 2
        // Predicated region
        $region77: #{tpu_custom_call.1} parent=75 // pred_check
          %p2522 = pneg %p181
        $region78: #{tpu_custom_call.1} parent=75 // pred_check_branch
          %2524 = sbr.rel (%p2522) target = $region80
        $region79: #{tpu_custom_call.1} parent=75 // pred_region
          %s2525 = sand.u32 %s166, 1
          %s2526 = scalar_lea.sflag [#allocation5], %s2525
          %s2527 = sand.u32 %s166, 1
          %s2528 = smul.addr %s2527, 64
          %s2529 = scalar_lea.vmem [#allocation14], %s2528
          %2530 = dma.done %s2526, 1024
        $region80: #{tpu_custom_call.1} parent=75 // pred_fallthru
          _
      $region76: #{tpu_custom_call.1} parent=5 // pred_fallthru
        _
    $region6: #{tpu_custom_call.1} parent=1 // loop_footer
      %s25 = sadd.s32 1, %s21
    $region7: #{tpu_custom_call.1} parent=1 // loop_footer_branch
      %20 = sbr.rel target = $region3
    $region8: #{tpu_custom_call.1} parent=1 // loop_exit
      _
    %2531 = vsyncpa [#allocation4], 1
    %s2532 = scalar_lea.sflag [#allocation4], 1
    %2533 = vsyncpa %s2532, 1
    %2534 = vsyncpa [#allocation7], 1
    %2535 = vsyncpa [#allocation10], 1
    %2536 = vsyncpa [#allocation13], 1
    %2537 = vsyncpa [#allocation5], 1
    %s2538 = scalar_lea.sflag [#allocation5], 1
    %2539 = vsyncpa %s2538, 1

</llo_original>
